<compile_context>
chip_gen: v6e
topology: v6e:2x2x1
jax: 0.10.0
libtpu: 0.0.40
codegen_flags: <defaults>
</compile_context>

<pallas_src>
import functools
import math

import jax
import jax.numpy as jnp
from jax.experimental import pallas as pl
from jax.experimental.pallas import tpu as pltpu  # noqa: F401  (TPU backend)

# Problem sizes (small, consistent with the module).
B = 2            # batch
SEQ_K = 8        # key / value points
SEQ_Q = 8        # query points
NUM_HIDDEN = 32  # num_hidden
N_HEADS = 4      # h
HEAD_DIM = NUM_HIDDEN // N_HEADS
LN_EPS = 1e-5


# ----------------------------------------------------------------------------
# Kernel: whole problem in one step; batch lives in the row (sublane) dimension.
# ----------------------------------------------------------------------------
def attention_kernel(k_ref, v_ref, q_ref, slab_ref, out_ref, attn_ref, *,
                     batch, seq_q, seq_k, hidden, heads):
    head_dim = hidden // heads
    scale = jnp.float32(1.0 / math.sqrt(head_dim))

    k_all = k_ref[...]      # [B*Sk, H]
    v_all = v_ref[...]      # [B*Sk, H]
    q_all = q_ref[...]      # [B*Sq, H]  (also the residual)
    slab = slab_ref[...]    # [2H+24, H]: rows 0:H  = final_linear W residual half,
                            #             rows H:2H = final_linear W multihead half,
                            #             row 2H = bias, 2H+8 = gamma, 2H+16 = beta
                            #             (8-row aligned, zero padded between)

    w_res = slab[0:hidden, :]                     # [H, H]
    w_mh = slab[hidden:2 * hidden, :]             # [H, H]
    bias_row = 2 * hidden                         # 64 (sublane-tile aligned)
    gamma_row = bias_row + 8                      # 72
    beta_row = gamma_row + 8                      # 80
    bias = slab[bias_row:bias_row + 1, :]         # [1, H]
    gamma = slab[gamma_row:gamma_row + 1, :]      # [1, H]
    beta = slab[beta_row:beta_row + 1, :]         # [1, H]

    # Per-head lane masks, built once (VPU compares only, no XLU work).
    lane_idx = jax.lax.broadcasted_iota(jnp.int32, (1, hidden), 1)
    head_masks = [
        ((lane_idx >= hd * head_dim) & (lane_idx < (hd + 1) * head_dim)
         ).astype(jnp.float32)
        for hd in range(heads)]

    # final_linear applied to the residual half of cat([residual, mh]), bias fused.
    lin = jnp.dot(q_all, w_res, preferred_element_type=jnp.float32) + bias  # [B*Sq, H]

    attn_tiles = {}
    for b in range(batch):
        rq = slice(b * seq_q, (b + 1) * seq_q)     # 8-row aligned static slices
        rk = slice(b * seq_k, (b + 1) * seq_k)
        qb = q_all[rq, :]                          # [Sq, H]
        kb = k_all[rk, :]                          # [Sk, H]
        vb = v_all[rk, :]                          # [Sk, H]

        # Accumulate head outputs directly in concat layout (lanes hd*Dh:(hd+1)*Dh).
        mh_b = jnp.zeros((seq_q, hidden), jnp.float32)
        for hd in range(heads):
            m = head_masks[hd]
            # scores = qh @ kh^T via masked full-width contraction (no lane slices,
            # no transpose materialized).
            scores = jax.lax.dot_general(
                qb, kb * m, (((1,), (1,)), ((), ())),
                preferred_element_type=jnp.float32) * scale          # [Sq, Sk]
            scores = scores - jnp.max(scores, axis=-1, keepdims=True)
            e = jnp.exp(scores)
            attn = e / jnp.sum(e, axis=-1, keepdims=True)
            attn_tiles[(hd, b)] = attn
            # head_out lands in its own lanes of mh_b; other lanes stay zero.
            mh_b = mh_b + jnp.dot(attn, vb * m,
                                  preferred_element_type=jnp.float32)  # [Sq, H]

        # Multihead half of final_linear, hoisted out of the head loop.
        acc_b = jnp.dot(mh_b, w_mh, preferred_element_type=jnp.float32)  # [Sq, H]

        # final_linear output + residual, then LayerNorm over the hidden dim;
        # write straight to the 8-row-aligned output slice (no sublane concat).
        pre = lin[rq, :] + qb + acc_b
        mean = jnp.mean(pre, axis=-1, keepdims=True)
        cent = pre - mean
        var = jnp.mean(cent * cent, axis=-1, keepdims=True)
        inv = jax.lax.rsqrt(var + jnp.float32(LN_EPS))      # EUP rsqrt
        out_ref[rq, :] = cent * inv * gamma + beta

    # Single sublane-stacked attention store, torch layout: index = head*B + b.
    stacked = jnp.concatenate(
        [attn_tiles[(hd, b)] for hd in range(heads) for b in range(batch)],
        axis=0)                                             # [h*B*Sq, Sk]
    attn_ref[...] = stacked


# ----------------------------------------------------------------------------
# Wrapper: fold batch into rows, pack all params into one aligned slab, one call.
# ----------------------------------------------------------------------------
def attention_forward(params, key_in, value_in, query_in):
    bsz, seq_k, hidden = key_in.shape
    seq_q = query_in.shape[1]

    k2 = key_in.reshape(bsz * seq_k, hidden)
    v2 = value_in.reshape(bsz * seq_k, hidden)
    q2 = query_in.reshape(bsz * seq_q, hidden)

    # One contiguous parameter slab -> one DMA.  bias/gamma/beta rows are padded
    # to 8-row (sublane-tile) boundaries so in-kernel extraction is aligned.
    pad = jnp.zeros((7, hidden), jnp.float32)
    slab = jnp.concatenate(
        [params["w"],                     # [2H, H]   rows 0:2H
         params["b"][None, :], pad,       # row 2H    (+7 pad rows)
         params["gamma"][None, :], pad,   # row 2H+8
         params["beta"][None, :], pad],   # row 2H+16
        axis=0)                           # [2H+24, H]

    kernel = functools.partial(
        attention_kernel,
        batch=bsz, seq_q=seq_q, seq_k=seq_k, hidden=hidden, heads=N_HEADS)

    # Rough advisory cost so XLA schedules around the (overhead-bound) call.
    cost = pl.CostEstimate(
        flops=160_000,
        transcendentals=600,
        bytes_accessed=(k2.size + v2.size + q2.size + slab.size
                        + bsz * seq_q * hidden
                        + N_HEADS * bsz * seq_q * seq_k) * 4)

    out, attns = pl.pallas_call(
        kernel,
        out_shape=(jax.ShapeDtypeStruct((bsz * seq_q, hidden), jnp.float32),
                   jax.ShapeDtypeStruct((N_HEADS * bsz * seq_q, seq_k),
                                        jnp.float32)),
        cost_estimate=cost,
    )(k2, v2, q2, slab)

    return (out.reshape(bsz, seq_q, hidden),
            attns.reshape(N_HEADS * bsz, seq_q, seq_k))


# ----------------------------------------------------------------------------
# Deterministic parameter init (PyTorch Linear / LayerNorm style).
# ----------------------------------------------------------------------------
def init_params(key):
    kw, kb, kg, kbe = jax.random.split(key, 4)
    fan_in = 2 * NUM_HIDDEN
    bound = 1.0 / math.sqrt(fan_in)
    # NOTE: w is stored [in, out] (used as cat @ W).  A real nn.Linear.weight
    # ([out, in]) must be transposed when importing checkpoints.
    w = jax.random.uniform(kw, (2 * NUM_HIDDEN, NUM_HIDDEN), jnp.float32, -bound, bound)
    b = jax.random.uniform(kb, (NUM_HIDDEN,), jnp.float32, -bound, bound)
    # LayerNorm defaults are ones/zeros; perturb slightly so the affine path is exercised.
    gamma = 1.0 + 0.1 * jax.random.normal(kg, (NUM_HIDDEN,), jnp.float32)
    beta = 0.1 * jax.random.normal(kbe, (NUM_HIDDEN,), jnp.float32)
    return {"w": w, "b": b, "gamma": gamma, "beta": beta}


# ----------------------------------------------------------------------------
# Plain-JAX reference mirroring the PyTorch forward (eval mode, dropout = id).
# ----------------------------------------------------------------------------
def reference(params, key_in, value_in, query_in):
    bsz, seq_k, hidden = key_in.shape
    seq_q = query_in.shape[1]
    dh = hidden // N_HEADS
    residual = query_in

    def split(t, s):
        return (t.reshape(bsz, s, N_HEADS, dh)
                 .transpose(2, 0, 1, 3)
                 .reshape(N_HEADS * bsz, s, dh))

    k = split(key_in, seq_k)
    v = split(value_in, seq_k)
    q = split(query_in, seq_q)

    attn = jnp.einsum("nqd,nkd->nqk", q, k) / math.sqrt(dh)
    attn = jax.nn.softmax(attn, axis=-1)
    result = jnp.einsum("nqk,nkd->nqd", attn, v)
    result = (result.reshape(N_HEADS, bsz, seq_q, dh)
                    .transpose(1, 2, 0, 3)
                    .reshape(bsz, seq_q, hidden))

    cat = jnp.concatenate([residual, result], axis=-1)
    out = cat @ params["w"] + params["b"]
    out = out + residual
    mean = out.mean(-1, keepdims=True)
    var = ((out - mean) ** 2).mean(-1, keepdims=True)
    out = (out - mean) / jnp.sqrt(var + LN_EPS) * params["gamma"] + params["beta"]
    return out, attn


if __name__ == "__main__":
    key = jax.random.PRNGKey(0)
    kk, kv, kq, kp = jax.random.split(key, 4)

    key_in = jax.random.normal(kk, (B, SEQ_K, NUM_HIDDEN), jnp.float32)
    value_in = jax.random.normal(kv, (B, SEQ_K, NUM_HIDDEN), jnp.float32)
    query_in = jax.random.normal(kq, (B, SEQ_Q, NUM_HIDDEN), jnp.float32)
    params = init_params(kp)

    out, attns = attention_forward(params, key_in, value_in, query_in)
    out = jax.block_until_ready(out)
    attns = jax.block_until_ready(attns)

    ref_out, ref_attn = reference(params, key_in, value_in, query_in)
    assert out.shape == (B, SEQ_Q, NUM_HIDDEN)
    assert attns.shape == (N_HEADS * B, SEQ_Q, SEQ_K)
    assert jnp.allclose(out, ref_out, rtol=1e-4, atol=1e-5), "result mismatch vs reference"
    assert jnp.allclose(attns, ref_attn, rtol=1e-4, atol=1e-5), "attn mismatch vs reference"

    print("KERNEL_OK")
</pallas_src>

<mosaic_0001>
module attributes {stable_mosaic.version = 11 : i64} {
  func.func @attention_kernel(%arg0: memref<16x32xf32, #tpu.memory_space<vmem>>, %arg1: memref<16x32xf32, #tpu.memory_space<vmem>>, %arg2: memref<16x32xf32, #tpu.memory_space<vmem>>, %arg3: memref<88x32xf32, #tpu.memory_space<vmem>>, %arg4: memref<16x32xf32, #tpu.memory_space<vmem>>, %arg5: memref<64x8xf32, #tpu.memory_space<vmem>>) attributes {dimension_semantics = [], scalar_prefetch = 0 : i64, scratch_operands = 0 : i64, tpu.core_type = #tpu.core_type<tc>} {
    %c0 = arith.constant 0 : index
    %c0_0 = arith.constant 0 : index
    %0 = vector.load %arg0[%c0, %c0_0] : memref<16x32xf32, #tpu.memory_space<vmem>>, vector<16x32xf32>
    %c0_1 = arith.constant 0 : index
    %c0_2 = arith.constant 0 : index
    %1 = vector.load %arg1[%c0_1, %c0_2] : memref<16x32xf32, #tpu.memory_space<vmem>>, vector<16x32xf32>
    %c0_3 = arith.constant 0 : index
    %c0_4 = arith.constant 0 : index
    %2 = vector.load %arg2[%c0_3, %c0_4] : memref<16x32xf32, #tpu.memory_space<vmem>>, vector<16x32xf32>
    %c0_5 = arith.constant 0 : index
    %c0_6 = arith.constant 0 : index
    %3 = vector.load %arg3[%c0_5, %c0_6] : memref<88x32xf32, #tpu.memory_space<vmem>>, vector<88x32xf32>
    %4 = vector.extract_strided_slice %3 {offsets = [0, 0], sizes = [32, 32], strides = [1, 1]} : vector<88x32xf32> to vector<32x32xf32>
    %5 = vector.extract_strided_slice %3 {offsets = [32, 0], sizes = [32, 32], strides = [1, 1]} : vector<88x32xf32> to vector<32x32xf32>
    %6 = vector.extract_strided_slice %3 {offsets = [64, 0], sizes = [1, 32], strides = [1, 1]} : vector<88x32xf32> to vector<1x32xf32>
    %7 = vector.extract_strided_slice %3 {offsets = [72, 0], sizes = [1, 32], strides = [1, 1]} : vector<88x32xf32> to vector<1x32xf32>
    %8 = vector.extract_strided_slice %3 {offsets = [80, 0], sizes = [1, 32], strides = [1, 1]} : vector<88x32xf32> to vector<1x32xf32>
    %9 = tpu.iota {dimensions = array<i32: 1>} : vector<1x32xi32>
    %c0_i32 = arith.constant 0 : i32
    %10 = vector.broadcast %c0_i32 : i32 to vector<1x32xi32>
    %11 = arith.cmpi sge, %9, %10 : vector<1x32xi32>
    %c8_i32 = arith.constant 8 : i32
    %12 = vector.broadcast %c8_i32 : i32 to vector<1x32xi32>
    %13 = arith.cmpi slt, %9, %12 : vector<1x32xi32>
    %14 = arith.andi %11, %13 : vector<1x32xi1>
    %15 = arith.extui %14 : vector<1x32xi1> to vector<1x32xi32>
    %16 = arith.sitofp %15 : vector<1x32xi32> to vector<1x32xf32>
    %c8_i32_7 = arith.constant 8 : i32
    %17 = vector.broadcast %c8_i32_7 : i32 to vector<1x32xi32>
    %18 = arith.cmpi sge, %9, %17 : vector<1x32xi32>
    %c16_i32 = arith.constant 16 : i32
    %19 = vector.broadcast %c16_i32 : i32 to vector<1x32xi32>
    %20 = arith.cmpi slt, %9, %19 : vector<1x32xi32>
    %21 = arith.andi %18, %20 : vector<1x32xi1>
    %22 = arith.extui %21 : vector<1x32xi1> to vector<1x32xi32>
    %23 = arith.sitofp %22 : vector<1x32xi32> to vector<1x32xf32>
    %c16_i32_8 = arith.constant 16 : i32
    %24 = vector.broadcast %c16_i32_8 : i32 to vector<1x32xi32>
    %25 = arith.cmpi sge, %9, %24 : vector<1x32xi32>
    %c24_i32 = arith.constant 24 : i32
    %26 = vector.broadcast %c24_i32 : i32 to vector<1x32xi32>
    %27 = arith.cmpi slt, %9, %26 : vector<1x32xi32>
    %28 = arith.andi %25, %27 : vector<1x32xi1>
    %29 = arith.extui %28 : vector<1x32xi1> to vector<1x32xi32>
    %30 = arith.sitofp %29 : vector<1x32xi32> to vector<1x32xf32>
    %c24_i32_9 = arith.constant 24 : i32
    %31 = vector.broadcast %c24_i32_9 : i32 to vector<1x32xi32>
    %32 = arith.cmpi sge, %9, %31 : vector<1x32xi32>
    %c32_i32 = arith.constant 32 : i32
    %33 = vector.broadcast %c32_i32 : i32 to vector<1x32xi32>
    %34 = arith.cmpi slt, %9, %33 : vector<1x32xi32>
    %35 = arith.andi %32, %34 : vector<1x32xi1>
    %36 = arith.extui %35 : vector<1x32xi1> to vector<1x32xi32>
    %37 = arith.sitofp %36 : vector<1x32xi32> to vector<1x32xf32>
    %cst = arith.constant dense<0.000000e+00> : vector<16x32xf32>
    %38 = tpu.matmul %2, %4, %cst {dimension_numbers = #tpu.dot_dimension_numbers<[1], [0], [0], [1], [0, 0, 1, 1], [], []>} : vector<16x32xf32>, vector<32x32xf32>, vector<16x32xf32> -> vector<16x32xf32>
    %39 = vector.broadcast %6 : vector<1x32xf32> to vector<16x32xf32>
    %40 = arith.addf %38, %39 : vector<16x32xf32>
    %41 = vector.extract_strided_slice %2 {offsets = [0, 0], sizes = [8, 32], strides = [1, 1]} : vector<16x32xf32> to vector<8x32xf32>
    %42 = vector.extract_strided_slice %0 {offsets = [0, 0], sizes = [8, 32], strides = [1, 1]} : vector<16x32xf32> to vector<8x32xf32>
    %43 = vector.extract_strided_slice %1 {offsets = [0, 0], sizes = [8, 32], strides = [1, 1]} : vector<16x32xf32> to vector<8x32xf32>
    %cst_10 = arith.constant 0.000000e+00 : f32
    %44 = vector.broadcast %cst_10 : f32 to vector<8x32xf32>
    %45 = vector.broadcast %16 : vector<1x32xf32> to vector<8x32xf32>
    %46 = arith.mulf %42, %45 : vector<8x32xf32>
    %cst_11 = arith.constant dense<0.000000e+00> : vector<8x8xf32>
    %47 = tpu.matmul %41, %46, %cst_11 {dimension_numbers = #tpu.dot_dimension_numbers<[1], [1], [0], [0], [0, 0, 1, 0], [], []>} : vector<8x32xf32>, vector<8x32xf32>, vector<8x8xf32> -> vector<8x8xf32>
    %cst_12 = arith.constant 0.353553385 : f32
    %48 = vector.broadcast %cst_12 : f32 to vector<8x8xf32>
    %49 = arith.mulf %47, %48 : vector<8x8xf32>
    %cst_13 = arith.constant dense<0xFF800000> : vector<8xf32>
    %50 = vector.multi_reduction <maximumf>, %49, %cst_13 [1] : vector<8x8xf32> to vector<8xf32>
    %51 = vector.shape_cast %50 : vector<8xf32> to vector<8x1xf32>
    %52 = vector.broadcast %51 : vector<8x1xf32> to vector<8x8xf32>
    %53 = arith.subf %49, %52 : vector<8x8xf32>
    %54 = math.exp %53 : vector<8x8xf32>
    %cst_14 = arith.constant dense<0.000000e+00> : vector<8xf32>
    %55 = vector.multi_reduction <add>, %54, %cst_14 [1] : vector<8x8xf32> to vector<8xf32>
    %56 = vector.shape_cast %55 : vector<8xf32> to vector<8x1xf32>
    %57 = vector.broadcast %56 : vector<8x1xf32> to vector<8x8xf32>
    %58 = arith.divf %54, %57 : vector<8x8xf32>
    %59 = vector.broadcast %16 : vector<1x32xf32> to vector<8x32xf32>
    %60 = arith.mulf %43, %59 : vector<8x32xf32>
    %cst_15 = arith.constant dense<0.000000e+00> : vector<8x32xf32>
    %61 = tpu.matmul %58, %60, %cst_15 {dimension_numbers = #tpu.dot_dimension_numbers<[1], [0], [0], [1], [0, 0, 1, 1], [], []>} : vector<8x8xf32>, vector<8x32xf32>, vector<8x32xf32> -> vector<8x32xf32>
    %62 = arith.addf %44, %61 : vector<8x32xf32>
    %63 = vector.broadcast %23 : vector<1x32xf32> to vector<8x32xf32>
    %64 = arith.mulf %42, %63 : vector<8x32xf32>
    %cst_16 = arith.constant dense<0.000000e+00> : vector<8x8xf32>
    %65 = tpu.matmul %41, %64, %cst_16 {dimension_numbers = #tpu.dot_dimension_numbers<[1], [1], [0], [0], [0, 0, 1, 0], [], []>} : vector<8x32xf32>, vector<8x32xf32>, vector<8x8xf32> -> vector<8x8xf32>
    %cst_17 = arith.constant 0.353553385 : f32
    %66 = vector.broadcast %cst_17 : f32 to vector<8x8xf32>
    %67 = arith.mulf %65, %66 : vector<8x8xf32>
    %cst_18 = arith.constant dense<0xFF800000> : vector<8xf32>
    %68 = vector.multi_reduction <maximumf>, %67, %cst_18 [1] : vector<8x8xf32> to vector<8xf32>
    %69 = vector.shape_cast %68 : vector<8xf32> to vector<8x1xf32>
    %70 = vector.broadcast %69 : vector<8x1xf32> to vector<8x8xf32>
    %71 = arith.subf %67, %70 : vector<8x8xf32>
    %72 = math.exp %71 : vector<8x8xf32>
    %cst_19 = arith.constant dense<0.000000e+00> : vector<8xf32>
    %73 = vector.multi_reduction <add>, %72, %cst_19 [1] : vector<8x8xf32> to vector<8xf32>
    %74 = vector.shape_cast %73 : vector<8xf32> to vector<8x1xf32>
    %75 = vector.broadcast %74 : vector<8x1xf32> to vector<8x8xf32>
    %76 = arith.divf %72, %75 : vector<8x8xf32>
    %77 = vector.broadcast %23 : vector<1x32xf32> to vector<8x32xf32>
    %78 = arith.mulf %43, %77 : vector<8x32xf32>
    %cst_20 = arith.constant dense<0.000000e+00> : vector<8x32xf32>
    %79 = tpu.matmul %76, %78, %cst_20 {dimension_numbers = #tpu.dot_dimension_numbers<[1], [0], [0], [1], [0, 0, 1, 1], [], []>} : vector<8x8xf32>, vector<8x32xf32>, vector<8x32xf32> -> vector<8x32xf32>
    %80 = arith.addf %62, %79 : vector<8x32xf32>
    %81 = vector.broadcast %30 : vector<1x32xf32> to vector<8x32xf32>
    %82 = arith.mulf %42, %81 : vector<8x32xf32>
    %cst_21 = arith.constant dense<0.000000e+00> : vector<8x8xf32>
    %83 = tpu.matmul %41, %82, %cst_21 {dimension_numbers = #tpu.dot_dimension_numbers<[1], [1], [0], [0], [0, 0, 1, 0], [], []>} : vector<8x32xf32>, vector<8x32xf32>, vector<8x8xf32> -> vector<8x8xf32>
    %cst_22 = arith.constant 0.353553385 : f32
    %84 = vector.broadcast %cst_22 : f32 to vector<8x8xf32>
    %85 = arith.mulf %83, %84 : vector<8x8xf32>
    %cst_23 = arith.constant dense<0xFF800000> : vector<8xf32>
    %86 = vector.multi_reduction <maximumf>, %85, %cst_23 [1] : vector<8x8xf32> to vector<8xf32>
    %87 = vector.shape_cast %86 : vector<8xf32> to vector<8x1xf32>
    %88 = vector.broadcast %87 : vector<8x1xf32> to vector<8x8xf32>
    %89 = arith.subf %85, %88 : vector<8x8xf32>
    %90 = math.exp %89 : vector<8x8xf32>
    %cst_24 = arith.constant dense<0.000000e+00> : vector<8xf32>
    %91 = vector.multi_reduction <add>, %90, %cst_24 [1] : vector<8x8xf32> to vector<8xf32>
    %92 = vector.shape_cast %91 : vector<8xf32> to vector<8x1xf32>
    %93 = vector.broadcast %92 : vector<8x1xf32> to vector<8x8xf32>
    %94 = arith.divf %90, %93 : vector<8x8xf32>
    %95 = vector.broadcast %30 : vector<1x32xf32> to vector<8x32xf32>
    %96 = arith.mulf %43, %95 : vector<8x32xf32>
    %cst_25 = arith.constant dense<0.000000e+00> : vector<8x32xf32>
    %97 = tpu.matmul %94, %96, %cst_25 {dimension_numbers = #tpu.dot_dimension_numbers<[1], [0], [0], [1], [0, 0, 1, 1], [], []>} : vector<8x8xf32>, vector<8x32xf32>, vector<8x32xf32> -> vector<8x32xf32>
    %98 = arith.addf %80, %97 : vector<8x32xf32>
    %99 = vector.broadcast %37 : vector<1x32xf32> to vector<8x32xf32>
    %100 = arith.mulf %42, %99 : vector<8x32xf32>
    %cst_26 = arith.constant dense<0.000000e+00> : vector<8x8xf32>
    %101 = tpu.matmul %41, %100, %cst_26 {dimension_numbers = #tpu.dot_dimension_numbers<[1], [1], [0], [0], [0, 0, 1, 0], [], []>} : vector<8x32xf32>, vector<8x32xf32>, vector<8x8xf32> -> vector<8x8xf32>
    %cst_27 = arith.constant 0.353553385 : f32
    %102 = vector.broadcast %cst_27 : f32 to vector<8x8xf32>
    %103 = arith.mulf %101, %102 : vector<8x8xf32>
    %cst_28 = arith.constant dense<0xFF800000> : vector<8xf32>
    %104 = vector.multi_reduction <maximumf>, %103, %cst_28 [1] : vector<8x8xf32> to vector<8xf32>
    %105 = vector.shape_cast %104 : vector<8xf32> to vector<8x1xf32>
    %106 = vector.broadcast %105 : vector<8x1xf32> to vector<8x8xf32>
    %107 = arith.subf %103, %106 : vector<8x8xf32>
    %108 = math.exp %107 : vector<8x8xf32>
    %cst_29 = arith.constant dense<0.000000e+00> : vector<8xf32>
    %109 = vector.multi_reduction <add>, %108, %cst_29 [1] : vector<8x8xf32> to vector<8xf32>
    %110 = vector.shape_cast %109 : vector<8xf32> to vector<8x1xf32>
    %111 = vector.broadcast %110 : vector<8x1xf32> to vector<8x8xf32>
    %112 = arith.divf %108, %111 : vector<8x8xf32>
    %113 = vector.broadcast %37 : vector<1x32xf32> to vector<8x32xf32>
    %114 = arith.mulf %43, %113 : vector<8x32xf32>
    %cst_30 = arith.constant dense<0.000000e+00> : vector<8x32xf32>
    %115 = tpu.matmul %112, %114, %cst_30 {dimension_numbers = #tpu.dot_dimension_numbers<[1], [0], [0], [1], [0, 0, 1, 1], [], []>} : vector<8x8xf32>, vector<8x32xf32>, vector<8x32xf32> -> vector<8x32xf32>
    %116 = arith.addf %98, %115 : vector<8x32xf32>
    %cst_31 = arith.constant dense<0.000000e+00> : vector<8x32xf32>
    %117 = tpu.matmul %116, %5, %cst_31 {dimension_numbers = #tpu.dot_dimension_numbers<[1], [0], [0], [1], [0, 0, 1, 1], [], []>} : vector<8x32xf32>, vector<32x32xf32>, vector<8x32xf32> -> vector<8x32xf32>
    %118 = vector.extract_strided_slice %40 {offsets = [0, 0], sizes = [8, 32], strides = [1, 1]} : vector<16x32xf32> to vector<8x32xf32>
    %119 = arith.addf %118, %41 : vector<8x32xf32>
    %120 = arith.addf %119, %117 : vector<8x32xf32>
    %cst_32 = arith.constant dense<0.000000e+00> : vector<8xf32>
    %121 = vector.multi_reduction <add>, %120, %cst_32 [1] : vector<8x32xf32> to vector<8xf32>
    %122 = vector.shape_cast %121 : vector<8xf32> to vector<8x1xf32>
    %cst_33 = arith.constant 3.200000e+01 : f32
    %123 = vector.broadcast %cst_33 : f32 to vector<8x1xf32>
    %124 = arith.divf %122, %123 : vector<8x1xf32>
    %125 = vector.broadcast %124 : vector<8x1xf32> to vector<8x32xf32>
    %126 = arith.subf %120, %125 : vector<8x32xf32>
    %127 = arith.mulf %126, %126 : vector<8x32xf32>
    %cst_34 = arith.constant dense<0.000000e+00> : vector<8xf32>
    %128 = vector.multi_reduction <add>, %127, %cst_34 [1] : vector<8x32xf32> to vector<8xf32>
    %129 = vector.shape_cast %128 : vector<8xf32> to vector<8x1xf32>
    %cst_35 = arith.constant 3.200000e+01 : f32
    %130 = vector.broadcast %cst_35 : f32 to vector<8x1xf32>
    %131 = arith.divf %129, %130 : vector<8x1xf32>
    %cst_36 = arith.constant 9.99999974E-6 : f32
    %132 = vector.broadcast %cst_36 : f32 to vector<8x1xf32>
    %133 = arith.addf %131, %132 : vector<8x1xf32>
    %134 = math.rsqrt %133 : vector<8x1xf32>
    %135 = vector.broadcast %134 : vector<8x1xf32> to vector<8x32xf32>
    %136 = arith.mulf %126, %135 : vector<8x32xf32>
    %137 = vector.broadcast %7 : vector<1x32xf32> to vector<8x32xf32>
    %138 = arith.mulf %136, %137 : vector<8x32xf32>
    %139 = vector.broadcast %8 : vector<1x32xf32> to vector<8x32xf32>
    %140 = arith.addf %138, %139 : vector<8x32xf32>
    %c0_37 = arith.constant 0 : index
    %c0_38 = arith.constant 0 : index
    %141 = vector.load %arg4[%c0_37, %c0_38] : memref<16x32xf32, #tpu.memory_space<vmem>>, vector<8x32xf32>
    tpu.vector_store %arg4[%c0_37, %c0_38], %140 {strides = array<i32>} : memref<16x32xf32, #tpu.memory_space<vmem>>, vector<8x32xf32>,
    %142 = vector.extract_strided_slice %2 {offsets = [8, 0], sizes = [8, 32], strides = [1, 1]} : vector<16x32xf32> to vector<8x32xf32>
    %143 = vector.extract_strided_slice %0 {offsets = [8, 0], sizes = [8, 32], strides = [1, 1]} : vector<16x32xf32> to vector<8x32xf32>
    %144 = vector.extract_strided_slice %1 {offsets = [8, 0], sizes = [8, 32], strides = [1, 1]} : vector<16x32xf32> to vector<8x32xf32>
    %cst_39 = arith.constant 0.000000e+00 : f32
    %145 = vector.broadcast %cst_39 : f32 to vector<8x32xf32>
    %146 = vector.broadcast %16 : vector<1x32xf32> to vector<8x32xf32>
    %147 = arith.mulf %143, %146 : vector<8x32xf32>
    %cst_40 = arith.constant dense<0.000000e+00> : vector<8x8xf32>
    %148 = tpu.matmul %142, %147, %cst_40 {dimension_numbers = #tpu.dot_dimension_numbers<[1], [1], [0], [0], [0, 0, 1, 0], [], []>} : vector<8x32xf32>, vector<8x32xf32>, vector<8x8xf32> -> vector<8x8xf32>
    %cst_41 = arith.constant 0.353553385 : f32
    %149 = vector.broadcast %cst_41 : f32 to vector<8x8xf32>
    %150 = arith.mulf %148, %149 : vector<8x8xf32>
    %cst_42 = arith.constant dense<0xFF800000> : vector<8xf32>
    %151 = vector.multi_reduction <maximumf>, %150, %cst_42 [1] : vector<8x8xf32> to vector<8xf32>
    %152 = vector.shape_cast %151 : vector<8xf32> to vector<8x1xf32>
    %153 = vector.broadcast %152 : vector<8x1xf32> to vector<8x8xf32>
    %154 = arith.subf %150, %153 : vector<8x8xf32>
    %155 = math.exp %154 : vector<8x8xf32>
    %cst_43 = arith.constant dense<0.000000e+00> : vector<8xf32>
    %156 = vector.multi_reduction <add>, %155, %cst_43 [1] : vector<8x8xf32> to vector<8xf32>
    %157 = vector.shape_cast %156 : vector<8xf32> to vector<8x1xf32>
    %158 = vector.broadcast %157 : vector<8x1xf32> to vector<8x8xf32>
    %159 = arith.divf %155, %158 : vector<8x8xf32>
    %160 = vector.broadcast %16 : vector<1x32xf32> to vector<8x32xf32>
    %161 = arith.mulf %144, %160 : vector<8x32xf32>
    %cst_44 = arith.constant dense<0.000000e+00> : vector<8x32xf32>
    %162 = tpu.matmul %159, %161, %cst_44 {dimension_numbers = #tpu.dot_dimension_numbers<[1], [0], [0], [1], [0, 0, 1, 1], [], []>} : vector<8x8xf32>, vector<8x32xf32>, vector<8x32xf32> -> vector<8x32xf32>
    %163 = arith.addf %145, %162 : vector<8x32xf32>
    %164 = vector.broadcast %23 : vector<1x32xf32> to vector<8x32xf32>
    %165 = arith.mulf %143, %164 : vector<8x32xf32>
    %cst_45 = arith.constant dense<0.000000e+00> : vector<8x8xf32>
    %166 = tpu.matmul %142, %165, %cst_45 {dimension_numbers = #tpu.dot_dimension_numbers<[1], [1], [0], [0], [0, 0, 1, 0], [], []>} : vector<8x32xf32>, vector<8x32xf32>, vector<8x8xf32> -> vector<8x8xf32>
    %cst_46 = arith.constant 0.353553385 : f32
    %167 = vector.broadcast %cst_46 : f32 to vector<8x8xf32>
    %168 = arith.mulf %166, %167 : vector<8x8xf32>
    %cst_47 = arith.constant dense<0xFF800000> : vector<8xf32>
    %169 = vector.multi_reduction <maximumf>, %168, %cst_47 [1] : vector<8x8xf32> to vector<8xf32>
    %170 = vector.shape_cast %169 : vector<8xf32> to vector<8x1xf32>
    %171 = vector.broadcast %170 : vector<8x1xf32> to vector<8x8xf32>
    %172 = arith.subf %168, %171 : vector<8x8xf32>
    %173 = math.exp %172 : vector<8x8xf32>
    %cst_48 = arith.constant dense<0.000000e+00> : vector<8xf32>
    %174 = vector.multi_reduction <add>, %173, %cst_48 [1] : vector<8x8xf32> to vector<8xf32>
    %175 = vector.shape_cast %174 : vector<8xf32> to vector<8x1xf32>
    %176 = vector.broadcast %175 : vector<8x1xf32> to vector<8x8xf32>
    %177 = arith.divf %173, %176 : vector<8x8xf32>
    %178 = vector.broadcast %23 : vector<1x32xf32> to vector<8x32xf32>
    %179 = arith.mulf %144, %178 : vector<8x32xf32>
    %cst_49 = arith.constant dense<0.000000e+00> : vector<8x32xf32>
    %180 = tpu.matmul %177, %179, %cst_49 {dimension_numbers = #tpu.dot_dimension_numbers<[1], [0], [0], [1], [0, 0, 1, 1], [], []>} : vector<8x8xf32>, vector<8x32xf32>, vector<8x32xf32> -> vector<8x32xf32>
    %181 = arith.addf %163, %180 : vector<8x32xf32>
    %182 = vector.broadcast %30 : vector<1x32xf32> to vector<8x32xf32>
    %183 = arith.mulf %143, %182 : vector<8x32xf32>
    %cst_50 = arith.constant dense<0.000000e+00> : vector<8x8xf32>
    %184 = tpu.matmul %142, %183, %cst_50 {dimension_numbers = #tpu.dot_dimension_numbers<[1], [1], [0], [0], [0, 0, 1, 0], [], []>} : vector<8x32xf32>, vector<8x32xf32>, vector<8x8xf32> -> vector<8x8xf32>
    %cst_51 = arith.constant 0.353553385 : f32
    %185 = vector.broadcast %cst_51 : f32 to vector<8x8xf32>
    %186 = arith.mulf %184, %185 : vector<8x8xf32>
    %cst_52 = arith.constant dense<0xFF800000> : vector<8xf32>
    %187 = vector.multi_reduction <maximumf>, %186, %cst_52 [1] : vector<8x8xf32> to vector<8xf32>
    %188 = vector.shape_cast %187 : vector<8xf32> to vector<8x1xf32>
    %189 = vector.broadcast %188 : vector<8x1xf32> to vector<8x8xf32>
    %190 = arith.subf %186, %189 : vector<8x8xf32>
    %191 = math.exp %190 : vector<8x8xf32>
    %cst_53 = arith.constant dense<0.000000e+00> : vector<8xf32>
    %192 = vector.multi_reduction <add>, %191, %cst_53 [1] : vector<8x8xf32> to vector<8xf32>
    %193 = vector.shape_cast %192 : vector<8xf32> to vector<8x1xf32>
    %194 = vector.broadcast %193 : vector<8x1xf32> to vector<8x8xf32>
    %195 = arith.divf %191, %194 : vector<8x8xf32>
    %196 = vector.broadcast %30 : vector<1x32xf32> to vector<8x32xf32>
    %197 = arith.mulf %144, %196 : vector<8x32xf32>
    %cst_54 = arith.constant dense<0.000000e+00> : vector<8x32xf32>
    %198 = tpu.matmul %195, %197, %cst_54 {dimension_numbers = #tpu.dot_dimension_numbers<[1], [0], [0], [1], [0, 0, 1, 1], [], []>} : vector<8x8xf32>, vector<8x32xf32>, vector<8x32xf32> -> vector<8x32xf32>
    %199 = arith.addf %181, %198 : vector<8x32xf32>
    %200 = vector.broadcast %37 : vector<1x32xf32> to vector<8x32xf32>
    %201 = arith.mulf %143, %200 : vector<8x32xf32>
    %cst_55 = arith.constant dense<0.000000e+00> : vector<8x8xf32>
    %202 = tpu.matmul %142, %201, %cst_55 {dimension_numbers = #tpu.dot_dimension_numbers<[1], [1], [0], [0], [0, 0, 1, 0], [], []>} : vector<8x32xf32>, vector<8x32xf32>, vector<8x8xf32> -> vector<8x8xf32>
    %cst_56 = arith.constant 0.353553385 : f32
    %203 = vector.broadcast %cst_56 : f32 to vector<8x8xf32>
    %204 = arith.mulf %202, %203 : vector<8x8xf32>
    %cst_57 = arith.constant dense<0xFF800000> : vector<8xf32>
    %205 = vector.multi_reduction <maximumf>, %204, %cst_57 [1] : vector<8x8xf32> to vector<8xf32>
    %206 = vector.shape_cast %205 : vector<8xf32> to vector<8x1xf32>
    %207 = vector.broadcast %206 : vector<8x1xf32> to vector<8x8xf32>
    %208 = arith.subf %204, %207 : vector<8x8xf32>
    %209 = math.exp %208 : vector<8x8xf32>
    %cst_58 = arith.constant dense<0.000000e+00> : vector<8xf32>
    %210 = vector.multi_reduction <add>, %209, %cst_58 [1] : vector<8x8xf32> to vector<8xf32>
    %211 = vector.shape_cast %210 : vector<8xf32> to vector<8x1xf32>
    %212 = vector.broadcast %211 : vector<8x1xf32> to vector<8x8xf32>
    %213 = arith.divf %209, %212 : vector<8x8xf32>
    %214 = vector.broadcast %37 : vector<1x32xf32> to vector<8x32xf32>
    %215 = arith.mulf %144, %214 : vector<8x32xf32>
    %cst_59 = arith.constant dense<0.000000e+00> : vector<8x32xf32>
    %216 = tpu.matmul %213, %215, %cst_59 {dimension_numbers = #tpu.dot_dimension_numbers<[1], [0], [0], [1], [0, 0, 1, 1], [], []>} : vector<8x8xf32>, vector<8x32xf32>, vector<8x32xf32> -> vector<8x32xf32>
    %217 = arith.addf %199, %216 : vector<8x32xf32>
    %cst_60 = arith.constant dense<0.000000e+00> : vector<8x32xf32>
    %218 = tpu.matmul %217, %5, %cst_60 {dimension_numbers = #tpu.dot_dimension_numbers<[1], [0], [0], [1], [0, 0, 1, 1], [], []>} : vector<8x32xf32>, vector<32x32xf32>, vector<8x32xf32> -> vector<8x32xf32>
    %219 = vector.extract_strided_slice %40 {offsets = [8, 0], sizes = [8, 32], strides = [1, 1]} : vector<16x32xf32> to vector<8x32xf32>
    %220 = arith.addf %219, %142 : vector<8x32xf32>
    %221 = arith.addf %220, %218 : vector<8x32xf32>
    %cst_61 = arith.constant dense<0.000000e+00> : vector<8xf32>
    %222 = vector.multi_reduction <add>, %221, %cst_61 [1] : vector<8x32xf32> to vector<8xf32>
    %223 = vector.shape_cast %222 : vector<8xf32> to vector<8x1xf32>
    %cst_62 = arith.constant 3.200000e+01 : f32
    %224 = vector.broadcast %cst_62 : f32 to vector<8x1xf32>
    %225 = arith.divf %223, %224 : vector<8x1xf32>
    %226 = vector.broadcast %225 : vector<8x1xf32> to vector<8x32xf32>
    %227 = arith.subf %221, %226 : vector<8x32xf32>
    %228 = arith.mulf %227, %227 : vector<8x32xf32>
    %cst_63 = arith.constant dense<0.000000e+00> : vector<8xf32>
    %229 = vector.multi_reduction <add>, %228, %cst_63 [1] : vector<8x32xf32> to vector<8xf32>
    %230 = vector.shape_cast %229 : vector<8xf32> to vector<8x1xf32>
    %cst_64 = arith.constant 3.200000e+01 : f32
    %231 = vector.broadcast %cst_64 : f32 to vector<8x1xf32>
    %232 = arith.divf %230, %231 : vector<8x1xf32>
    %cst_65 = arith.constant 9.99999974E-6 : f32
    %233 = vector.broadcast %cst_65 : f32 to vector<8x1xf32>
    %234 = arith.addf %232, %233 : vector<8x1xf32>
    %235 = math.rsqrt %234 : vector<8x1xf32>
    %236 = vector.broadcast %235 : vector<8x1xf32> to vector<8x32xf32>
    %237 = arith.mulf %227, %236 : vector<8x32xf32>
    %238 = vector.broadcast %7 : vector<1x32xf32> to vector<8x32xf32>
    %239 = arith.mulf %237, %238 : vector<8x32xf32>
    %240 = vector.broadcast %8 : vector<1x32xf32> to vector<8x32xf32>
    %241 = arith.addf %239, %240 : vector<8x32xf32>
    %c8 = arith.constant 8 : index
    %c0_66 = arith.constant 0 : index
    %242 = vector.load %arg4[%c8, %c0_66] : memref<16x32xf32, #tpu.memory_space<vmem>>, vector<8x32xf32>
    tpu.vector_store %arg4[%c8, %c0_66], %241 {strides = array<i32>} : memref<16x32xf32, #tpu.memory_space<vmem>>, vector<8x32xf32>,
    %243 = tpu.concatenate %58, %159, %76, %177, %94, %195, %112, %213 in 0 : vector<8x8xf32>, vector<8x8xf32>, vector<8x8xf32>, vector<8x8xf32>, vector<8x8xf32>, vector<8x8xf32>, vector<8x8xf32>, vector<8x8xf32> -> vector<64x8xf32>
    %c0_67 = arith.constant 0 : index
    %c0_68 = arith.constant 0 : index
    %244 = vector.load %arg5[%c0_67, %c0_68] : memref<64x8xf32, #tpu.memory_space<vmem>>, vector<64x8xf32>
    tpu.vector_store %arg5[%c0_67, %c0_68], %243 {strides = array<i32>} : memref<64x8xf32, #tpu.memory_space<vmem>>, vector<64x8xf32>,
    return
  }
}

</mosaic_0001>

<llo_original>
// kernel: tpu_custom_call.1
$region0: #{tpu_custom_call.1}
  #allocation0 [shape = 'u32[]', space=smem, size = 0x4, offset = 0x4, fixed_abs, tag = 'smem constant byte address 0x4 - core index']
  #allocation1 [shape = 'u32[144,128]{1,0:T(1,128)}', space=vmem, size = 0x12000, scoped, tag = 'internal scratch']
  %s0 = inlined_call_operand.vmem [shape: f32[16,32], index: 0, kind: input, shape index: {}]
  %s1 = inlined_call_operand.vmem [shape: f32[16,32], index: 1, kind: input, shape index: {}]
  %s2 = inlined_call_operand.vmem [shape: f32[16,32], index: 2, kind: input, shape index: {}]
  %s3 = inlined_call_operand.vmem [shape: f32[88,32], index: 3, kind: input, shape index: {}]
  %s4 = inlined_call_operand.hbm [shape: f32[16,32], index: 4, kind: output, shape index: {0}]
  %s5 = inlined_call_operand.vmem [shape: f32[64,8], index: 5, kind: output, shape index: {1}]
  %6 = xla_tuple %s4, %s5
  %s7 = sld [smem:[#allocation0]]
  $region34: #{tpu_custom_call.1} parent=0
    _
  %s9 = ssub.s32 1, %s7
  %s10 = scalar_select 0, %s9, %s7
  $region1: #{tpu_custom_call.1} parent=0
    #allocation2 [shape = 'u8[8192]{0}', space=vmem, size = 0x2000, scoped, tag = 'output window, operand 0, single buffered']
    #allocation3 [shape = 's32[1]{0}', space=sflag, size = 0x4, scoped, tag = 'scoped memory for tpu_custom_call.1']
    %11 = vsyncpa [#allocation3], 0
    // Predicated region
    $region2: #{tpu_custom_call.1} parent=1 // pred_check
      _
    $region3: #{tpu_custom_call.1} parent=1 // pred_check_branch
      %13 = sbr.rel (0) target = $region5
    $region4: #{tpu_custom_call.1} parent=1 // pred_region
      _
    $region5: #{tpu_custom_call.1} parent=1 // pred_fallthru
      _
    // Predicated region
    $region6: #{tpu_custom_call.1} parent=1 // pred_check
      _
    $region7: #{tpu_custom_call.1} parent=1 // pred_check_branch
      %15 = sbr.rel (0) target = $region9
    $region8: #{tpu_custom_call.1} parent=1 // pred_region
      _
    $region9: #{tpu_custom_call.1} parent=1 // pred_fallthru
      _
    // Predicated region
    $region10: #{tpu_custom_call.1} parent=1 // pred_check
      _
    $region11: #{tpu_custom_call.1} parent=1 // pred_check_branch
      %17 = sbr.rel (0) target = $region13
    $region12: #{tpu_custom_call.1} parent=1 // pred_region
      _
    $region13: #{tpu_custom_call.1} parent=1 // pred_fallthru
      _
    // Predicated region
    $region14: #{tpu_custom_call.1} parent=1 // pred_check
      _
    $region15: #{tpu_custom_call.1} parent=1 // pred_check_branch
      %19 = sbr.rel (0) target = $region17
    $region16: #{tpu_custom_call.1} parent=1 // pred_region
      _
    $region17: #{tpu_custom_call.1} parent=1 // pred_fallthru
      _
    %v20 = vld [vmem:[%s0] sm:$0xff]
    %v21 = vld [vmem:[%s0 + $0x8] sm:$0xff]
    %v22 = vld [vmem:[%s1] sm:$0xff]
    %v23 = vld [vmem:[%s1 + $0x8] sm:$0xff]
    %v24 = vld [vmem:[%s2] sm:$0xff]
    %v25 = vld [vmem:[%s2 + $0x8] sm:$0xff]
    %v26 = vld [vmem:[%s3] sm:$0xff]
    %v27 = vld [vmem:[%s3 + $0x8] sm:$0xff]
    %v28 = vld [vmem:[%s3 + $0x10] sm:$0xff]
    %v29 = vld [vmem:[%s3 + $0x18] sm:$0xff]
    %v30 = vld [vmem:[%s3 + $0x20] sm:$0xff]
    %v31 = vld [vmem:[%s3 + $0x28] sm:$0xff]
    %v32 = vld [vmem:[%s3 + $0x30] sm:$0xff]
    %v33 = vld [vmem:[%s3 + $0x38] sm:$0xff]
    %v34 = vld [vmem:[%s3 + $0x40] sm:$0xff]
    %v35 = vld [vmem:[%s3 + $0x48] sm:$0xff]
    %v36 = vld [vmem:[%s3 + $0x50] sm:$0xff]
    %v37 = vlaneseq
    %v38 = vand.u32 %v37, 127
    %vm39 = vcmp.ge.s32.totalorder %v38, 0
    %vm40 = vcmp.lt.s32.totalorder %v38, 8
    %vm41 = vmand %vm39, %vm40
    %v42 = vsel %vm41, 1, 0
    %v43 = vcvt.s32.f32 %v42
    %vm44 = vcmp.ge.s32.totalorder %v38, 8
    %vm45 = vcmp.lt.s32.totalorder %v38, 16
    %vm46 = vmand %vm44, %vm45
    %v47 = vsel %vm46, 1, 0
    %v48 = vcvt.s32.f32 %v47
    %vm49 = vcmp.ge.s32.totalorder %v38, 16
    %vm50 = vcmp.lt.s32.totalorder %v38, 24
    %vm51 = vmand %vm49, %vm50
    %v52 = vsel %vm51, 1, 0
    %v53 = vcvt.s32.f32 %v52
    %vm54 = vcmp.ge.s32.totalorder %v38, 24
    %vm55 = vcmp.lt.s32.totalorder %v38, 32
    %vm56 = vmand %vm54, %vm55
    %v57 = vsel %vm56, 1, 0
    %v58 = vcvt.s32.f32 %v57
    %v59 = vlaneseq
    %v60 = vshrl.u32 %v59, 7
    %v61 = vsub.s32 0, %v60
    %v62 = vrot.slane %v34, %v61
    %vm63 = vcmask 261120
    %v65 = vsel %vm63, %v24, 0
    %v68 = vsel %vm63, %v25, 0
    %70 = vmatprep.subr.mxu0 0.0
    %71 = vmatpush1.msra.mxu0 0.0
    %72 = vmatprep.subr.mxu0 0.0
    %73 = vmatpush1.msra.mxu0 0.0
    %74 = vmatprep.subr.mxu0 0.0
    %75 = vmatpush1.msra.mxu0 0.0
    %76 = vmatprep.subr.mxu0 0.0
    %77 = vmatpush1.msra.mxu0 0.0
    %78 = vmatprep.subr.mxu0 0.0
    %79 = vmatpush1.msra.mxu0 0.0
    %80 = vmatprep.subr.mxu0 0.0
    %81 = vmatpush1.msra.mxu0 0.0
    %82 = vmatprep.subr.mxu0 0.0
    %83 = vmatpush1.msra.mxu0 0.0
    %84 = vmatprep.subr.mxu0 0.0
    %85 = vmatpush1.msra.mxu0 0.0
    %86 = vmatprep.subr.mxu0 0.0
    %87 = vmatpush1.msra.mxu0 0.0
    %88 = vmatprep.subr.mxu0 0.0
    %89 = vmatpush1.msra.mxu0 0.0
    %90 = vmatprep.subr.mxu0 0.0
    %91 = vmatpush1.msra.mxu0 0.0
    %92 = vmatprep.subr.mxu0 0.0
    %93 = vmatpush1.msra.mxu0 0.0
    %94 = vmatprep.subr.mxu0 0.0
    %95 = vmatpush1.msra.mxu0 %v29
    %96 = vmatprep.subr.mxu0 0.0
    %97 = vmatpush1.msra.mxu0 %v28
    %98 = vmatprep.subr.mxu0 0.0
    %99 = vmatpush1.msra.mxu0 %v27
    %100 = vmatprep.subr.mxu0 0.0
    %101 = vmatpush1.msra.mxu0 %v26
    %102 = vmatprep.subr.mxu0 0.0
    %103 = vmatpush2.msra.mxu0 0.0
    %104 = vmatprep.subr.mxu0 0.0
    %105 = vmatpush2.msra.mxu0 0.0
    %106 = vmatprep.subr.mxu0 0.0
    %107 = vmatpush2.msra.mxu0 0.0
    %108 = vmatprep.subr.mxu0 0.0
    %109 = vmatpush2.msra.mxu0 0.0
    %110 = vmatprep.subr.mxu0 0.0
    %111 = vmatpush2.msra.mxu0 0.0
    %112 = vmatprep.subr.mxu0 0.0
    %113 = vmatpush2.msra.mxu0 0.0
    %114 = vmatprep.subr.mxu0 0.0
    %115 = vmatpush2.msra.mxu0 0.0
    %116 = vmatprep.subr.mxu0 0.0
    %117 = vmatpush2.msra.mxu0 0.0
    %118 = vmatprep.subr.mxu0 0.0
    %119 = vmatpush2.msra.mxu0 0.0
    %120 = vmatprep.subr.mxu0 0.0
    %121 = vmatpush2.msra.mxu0 0.0
    %122 = vmatprep.subr.mxu0 0.0
    %123 = vmatpush2.msra.mxu0 0.0
    %124 = vmatprep.subr.mxu0 0.0
    %125 = vmatpush2.msra.mxu0 0.0
    %126 = vmatprep.subr.mxu0 0.0
    %127 = vmatpush2.msra.mxu0 0.0
    %128 = vmatprep.subr.mxu0 0.0
    %129 = vmatpush2.msra.mxu0 0.0
    %130 = vmatprep.subr.mxu0 0.0
    %131 = vmatpush2.msra.mxu0 0.0
    %132 = vmatprep.subr.mxu0 0.0
    %133 = vmatpush2.msra.mxu0 0.0
    %134 = vmatprep.mubr.f32.mxu0 0.0
    %135 = vmatmul.mubr.f32.gmra.mxu0 %v65
    %v136 = vpop.f32.mrf.mxu0
    %v137 = vadd.f32 %v62, %v136
    %v138 = vpop.f32.mrf.mxu0
    %139 = vmatprep.mubr.f32.mxu0 0.0
    %140 = vmatmul.mubr.f32.gmra.mxu0 %v68
    %v141 = vpop.f32.mrf.mxu0
    %v142 = vadd.f32 %v62, %v141
    %v143 = vpop.f32.mrf.mxu0
    %144 = vdwg.mxu0
    %v145 = vmul.f32 %v20, %v43
    %v147 = vsel %vm63, %v145, 0
    %149 = vmatprep.subr.mxu0 0.0
    %150 = vmatpush1.xpose.msra.mxu0 0.0
    %151 = vmatprep.subr.mxu0 0.0
    %152 = vmatpush1.xpose.msra.mxu0 0.0
    %153 = vmatprep.subr.mxu0 0.0
    %154 = vmatpush1.xpose.msra.mxu0 0.0
    %155 = vmatprep.subr.mxu0 0.0
    %156 = vmatpush1.xpose.msra.mxu0 0.0
    %157 = vmatprep.subr.mxu0 0.0
    %158 = vmatpush1.xpose.msra.mxu0 0.0
    %159 = vmatprep.subr.mxu0 0.0
    %160 = vmatpush1.xpose.msra.mxu0 0.0
    %161 = vmatprep.subr.mxu0 0.0
    %162 = vmatpush1.xpose.msra.mxu0 0.0
    %163 = vmatprep.subr.mxu0 0.0
    %164 = vmatpush1.xpose.msra.mxu0 0.0
    %165 = vmatprep.subr.mxu0 0.0
    %166 = vmatpush1.xpose.msra.mxu0 0.0
    %167 = vmatprep.subr.mxu0 0.0
    %168 = vmatpush1.xpose.msra.mxu0 0.0
    %169 = vmatprep.subr.mxu0 0.0
    %170 = vmatpush1.xpose.msra.mxu0 0.0
    %171 = vmatprep.subr.mxu0 0.0
    %172 = vmatpush1.xpose.msra.mxu0 0.0
    %173 = vmatprep.subr.mxu0 0.0
    %174 = vmatpush1.xpose.msra.mxu0 0.0
    %175 = vmatprep.subr.mxu0 0.0
    %176 = vmatpush1.xpose.msra.mxu0 0.0
    %177 = vmatprep.subr.mxu0 0.0
    %178 = vmatpush1.xpose.msra.mxu0 0.0
    %179 = vmatprep.subr.mxu0 0.0
    %180 = vmatpush1.xpose.msra.mxu0 %v147
    %181 = vmatprep.subr.mxu0 0.0
    %182 = vmatpush2.xpose.msra.mxu0 0.0
    %183 = vmatprep.subr.mxu0 0.0
    %184 = vmatpush2.xpose.msra.mxu0 0.0
    %185 = vmatprep.subr.mxu0 0.0
    %186 = vmatpush2.xpose.msra.mxu0 0.0
    %187 = vmatprep.subr.mxu0 0.0
    %188 = vmatpush2.xpose.msra.mxu0 0.0
    %189 = vmatprep.subr.mxu0 0.0
    %190 = vmatpush2.xpose.msra.mxu0 0.0
    %191 = vmatprep.subr.mxu0 0.0
    %192 = vmatpush2.xpose.msra.mxu0 0.0
    %193 = vmatprep.subr.mxu0 0.0
    %194 = vmatpush2.xpose.msra.mxu0 0.0
    %195 = vmatprep.subr.mxu0 0.0
    %196 = vmatpush2.xpose.msra.mxu0 0.0
    %197 = vmatprep.subr.mxu0 0.0
    %198 = vmatpush2.xpose.msra.mxu0 0.0
    %199 = vmatprep.subr.mxu0 0.0
    %200 = vmatpush2.xpose.msra.mxu0 0.0
    %201 = vmatprep.subr.mxu0 0.0
    %202 = vmatpush2.xpose.msra.mxu0 0.0
    %203 = vmatprep.subr.mxu0 0.0
    %204 = vmatpush2.xpose.msra.mxu0 0.0
    %205 = vmatprep.subr.mxu0 0.0
    %206 = vmatpush2.xpose.msra.mxu0 0.0
    %207 = vmatprep.subr.mxu0 0.0
    %208 = vmatpush2.xpose.msra.mxu0 0.0
    %209 = vmatprep.subr.mxu0 0.0
    %210 = vmatpush2.xpose.msra.mxu0 0.0
    %211 = vmatprep.subr.mxu0 0.0
    %212 = vmatpush2.xpose.msra.mxu0 0.0
    %213 = vmatprep.mubr.f32.mxu0 0.0
    %214 = vmatmul.mubr.f32.gmra.mxu0 %v65
    %v215 = vpop.f32.mrf.mxu0
    %v216 = vadd.f32 0.0, %v215
    %v217 = vpop.f32.mrf.mxu0
    %218 = vdwg.mxu0
    %v219 = vmul.f32 %v216, 0.35355338
    %vm220 = vcmask 64512
    %v221 = vsel %vm220, %v219, -inf
    %222 = vmax.xlane.f32.xlu0 %v221
    %v223 = vpop.xlane.xlu0 %222
    %v224 = vsub.f32 %v219, %v223
    %v225 = vmul.f32 %v224, 1.442695
    %v226 = vpow.pop %v225
    %v227 = vsel %vm220, %v226, 0.0
    %228 = vadd.xlane.f32.xlu0 %v227
    %v229 = vpop.xlane.xlu0 %228
    %v230 = vrcp.pop %v229
    %v231 = vmul.f32 %v226, %v230
    %v232 = vmul.f32 %v22, %v43
    %v233 = vmul.f32 %v20, %v48
    %v235 = vsel %vm63, %v233, 0
    %237 = vmatprep.subr.mxu0 0.0
    %238 = vmatpush1.xpose.msra.mxu0 0.0
    %239 = vmatprep.subr.mxu0 0.0
    %240 = vmatpush1.xpose.msra.mxu0 0.0
    %241 = vmatprep.subr.mxu0 0.0
    %242 = vmatpush1.xpose.msra.mxu0 0.0
    %243 = vmatprep.subr.mxu0 0.0
    %244 = vmatpush1.xpose.msra.mxu0 0.0
    %245 = vmatprep.subr.mxu0 0.0
    %246 = vmatpush1.xpose.msra.mxu0 0.0
    %247 = vmatprep.subr.mxu0 0.0
    %248 = vmatpush1.xpose.msra.mxu0 0.0
    %249 = vmatprep.subr.mxu0 0.0
    %250 = vmatpush1.xpose.msra.mxu0 0.0
    %251 = vmatprep.subr.mxu0 0.0
    %252 = vmatpush1.xpose.msra.mxu0 0.0
    %253 = vmatprep.subr.mxu0 0.0
    %254 = vmatpush1.xpose.msra.mxu0 0.0
    %255 = vmatprep.subr.mxu0 0.0
    %256 = vmatpush1.xpose.msra.mxu0 0.0
    %257 = vmatprep.subr.mxu0 0.0
    %258 = vmatpush1.xpose.msra.mxu0 0.0
    %259 = vmatprep.subr.mxu0 0.0
    %260 = vmatpush1.xpose.msra.mxu0 0.0
    %261 = vmatprep.subr.mxu0 0.0
    %262 = vmatpush1.xpose.msra.mxu0 0.0
    %263 = vmatprep.subr.mxu0 0.0
    %264 = vmatpush1.xpose.msra.mxu0 0.0
    %265 = vmatprep.subr.mxu0 0.0
    %266 = vmatpush1.xpose.msra.mxu0 0.0
    %267 = vmatprep.subr.mxu0 0.0
    %268 = vmatpush1.xpose.msra.mxu0 %v235
    %269 = vmatprep.subr.mxu0 0.0
    %270 = vmatpush2.xpose.msra.mxu0 0.0
    %271 = vmatprep.subr.mxu0 0.0
    %272 = vmatpush2.xpose.msra.mxu0 0.0
    %273 = vmatprep.subr.mxu0 0.0
    %274 = vmatpush2.xpose.msra.mxu0 0.0
    %275 = vmatprep.subr.mxu0 0.0
    %276 = vmatpush2.xpose.msra.mxu0 0.0
    %277 = vmatprep.subr.mxu0 0.0
    %278 = vmatpush2.xpose.msra.mxu0 0.0
    %279 = vmatprep.subr.mxu0 0.0
    %280 = vmatpush2.xpose.msra.mxu0 0.0
    %281 = vmatprep.subr.mxu0 0.0
    %282 = vmatpush2.xpose.msra.mxu0 0.0
    %283 = vmatprep.subr.mxu0 0.0
    %284 = vmatpush2.xpose.msra.mxu0 0.0
    %285 = vmatprep.subr.mxu0 0.0
    %286 = vmatpush2.xpose.msra.mxu0 0.0
    %287 = vmatprep.subr.mxu0 0.0
    %288 = vmatpush2.xpose.msra.mxu0 0.0
    %289 = vmatprep.subr.mxu0 0.0
    %290 = vmatpush2.xpose.msra.mxu0 0.0
    %291 = vmatprep.subr.mxu0 0.0
    %292 = vmatpush2.xpose.msra.mxu0 0.0
    %293 = vmatprep.subr.mxu0 0.0
    %294 = vmatpush2.xpose.msra.mxu0 0.0
    %295 = vmatprep.subr.mxu0 0.0
    %296 = vmatpush2.xpose.msra.mxu0 0.0
    %297 = vmatprep.subr.mxu0 0.0
    %298 = vmatpush2.xpose.msra.mxu0 0.0
    %299 = vmatprep.subr.mxu0 0.0
    %300 = vmatpush2.xpose.msra.mxu0 0.0
    %301 = vmatprep.mubr.f32.mxu0 0.0
    %302 = vmatmul.mubr.f32.gmra.mxu0 %v65
    %v303 = vpop.f32.mrf.mxu0
    %v304 = vadd.f32 0.0, %v303
    %v305 = vpop.f32.mrf.mxu0
    %306 = vdwg.mxu0
    %v307 = vmul.f32 %v304, 0.35355338
    %v308 = vsel %vm220, %v307, -inf
    %309 = vmax.xlane.f32.xlu0 %v308
    %v310 = vpop.xlane.xlu0 %309
    %v311 = vsub.f32 %v307, %v310
    %v312 = vmul.f32 %v311, 1.442695
    %v313 = vpow.pop %v312
    %v314 = vsel %vm220, %v313, 0.0
    %315 = vadd.xlane.f32.xlu0 %v314
    %v316 = vpop.xlane.xlu0 %315
    %v317 = vrcp.pop %v316
    %v318 = vmul.f32 %v313, %v317
    %v319 = vmul.f32 %v22, %v48
    %v321 = vsel %vm220, %v318, 0
    %323 = vmatprep.subr.mxu0 0.0
    %324 = vmatpush1.msra.mxu0 0.0
    %325 = vmatprep.subr.mxu0 0.0
    %326 = vmatpush1.msra.mxu0 0.0
    %327 = vmatprep.subr.mxu0 0.0
    %328 = vmatpush1.msra.mxu0 0.0
    %329 = vmatprep.subr.mxu0 0.0
    %330 = vmatpush1.msra.mxu0 0.0
    %331 = vmatprep.subr.mxu0 0.0
    %332 = vmatpush1.msra.mxu0 0.0
    %333 = vmatprep.subr.mxu0 0.0
    %334 = vmatpush1.msra.mxu0 0.0
    %335 = vmatprep.subr.mxu0 0.0
    %336 = vmatpush1.msra.mxu0 0.0
    %337 = vmatprep.subr.mxu0 0.0
    %338 = vmatpush1.msra.mxu0 0.0
    %339 = vmatprep.subr.mxu0 0.0
    %340 = vmatpush1.msra.mxu0 0.0
    %341 = vmatprep.subr.mxu0 0.0
    %342 = vmatpush1.msra.mxu0 0.0
    %343 = vmatprep.subr.mxu0 0.0
    %344 = vmatpush1.msra.mxu0 0.0
    %345 = vmatprep.subr.mxu0 0.0
    %346 = vmatpush1.msra.mxu0 0.0
    %347 = vmatprep.subr.mxu0 0.0
    %348 = vmatpush1.msra.mxu0 0.0
    %349 = vmatprep.subr.mxu0 0.0
    %350 = vmatpush1.msra.mxu0 0.0
    %351 = vmatprep.subr.mxu0 0.0
    %352 = vmatpush1.msra.mxu0 0.0
    %353 = vmatprep.subr.mxu0 0.0
    %354 = vmatpush1.msra.mxu0 %v319
    %355 = vmatprep.subr.mxu0 0.0
    %356 = vmatpush2.msra.mxu0 0.0
    %357 = vmatprep.subr.mxu0 0.0
    %358 = vmatpush2.msra.mxu0 0.0
    %359 = vmatprep.subr.mxu0 0.0
    %360 = vmatpush2.msra.mxu0 0.0
    %361 = vmatprep.subr.mxu0 0.0
    %362 = vmatpush2.msra.mxu0 0.0
    %363 = vmatprep.subr.mxu0 0.0
    %364 = vmatpush2.msra.mxu0 0.0
    %365 = vmatprep.subr.mxu0 0.0
    %366 = vmatpush2.msra.mxu0 0.0
    %367 = vmatprep.subr.mxu0 0.0
    %368 = vmatpush2.msra.mxu0 0.0
    %369 = vmatprep.subr.mxu0 0.0
    %370 = vmatpush2.msra.mxu0 0.0
    %371 = vmatprep.subr.mxu0 0.0
    %372 = vmatpush2.msra.mxu0 0.0
    %373 = vmatprep.subr.mxu0 0.0
    %374 = vmatpush2.msra.mxu0 0.0
    %375 = vmatprep.subr.mxu0 0.0
    %376 = vmatpush2.msra.mxu0 0.0
    %377 = vmatprep.subr.mxu0 0.0
    %378 = vmatpush2.msra.mxu0 0.0
    %379 = vmatprep.subr.mxu0 0.0
    %380 = vmatpush2.msra.mxu0 0.0
    %381 = vmatprep.subr.mxu0 0.0
    %382 = vmatpush2.msra.mxu0 0.0
    %383 = vmatprep.subr.mxu0 0.0
    %384 = vmatpush2.msra.mxu0 0.0
    %385 = vmatprep.subr.mxu0 0.0
    %386 = vmatpush2.msra.mxu0 0.0
    %387 = vmatprep.mubr.f32.mxu0 0.0
    %388 = vmatmul.mubr.f32.gmra.mxu0 %v321
    %v389 = vpop.f32.mrf.mxu0
    %v390 = vadd.f32 0.0, %v389
    %v391 = vpop.f32.mrf.mxu0
    %392 = vdwg.mxu0
    %v394 = vsel %vm220, %v231, 0
    %396 = vmatprep.subr.mxu0 0.0
    %397 = vmatpush1.msra.mxu0 0.0
    %398 = vmatprep.subr.mxu0 0.0
    %399 = vmatpush1.msra.mxu0 0.0
    %400 = vmatprep.subr.mxu0 0.0
    %401 = vmatpush1.msra.mxu0 0.0
    %402 = vmatprep.subr.mxu0 0.0
    %403 = vmatpush1.msra.mxu0 0.0
    %404 = vmatprep.subr.mxu0 0.0
    %405 = vmatpush1.msra.mxu0 0.0
    %406 = vmatprep.subr.mxu0 0.0
    %407 = vmatpush1.msra.mxu0 0.0
    %408 = vmatprep.subr.mxu0 0.0
    %409 = vmatpush1.msra.mxu0 0.0
    %410 = vmatprep.subr.mxu0 0.0
    %411 = vmatpush1.msra.mxu0 0.0
    %412 = vmatprep.subr.mxu0 0.0
    %413 = vmatpush1.msra.mxu0 0.0
    %414 = vmatprep.subr.mxu0 0.0
    %415 = vmatpush1.msra.mxu0 0.0
    %416 = vmatprep.subr.mxu0 0.0
    %417 = vmatpush1.msra.mxu0 0.0
    %418 = vmatprep.subr.mxu0 0.0
    %419 = vmatpush1.msra.mxu0 0.0
    %420 = vmatprep.subr.mxu0 0.0
    %421 = vmatpush1.msra.mxu0 0.0
    %422 = vmatprep.subr.mxu0 0.0
    %423 = vmatpush1.msra.mxu0 0.0
    %424 = vmatprep.subr.mxu0 0.0
    %425 = vmatpush1.msra.mxu0 0.0
    %426 = vmatprep.subr.mxu0 0.0
    %427 = vmatpush1.msra.mxu0 %v232
    %428 = vmatprep.subr.mxu0 0.0
    %429 = vmatpush2.msra.mxu0 0.0
    %430 = vmatprep.subr.mxu0 0.0
    %431 = vmatpush2.msra.mxu0 0.0
    %432 = vmatprep.subr.mxu0 0.0
    %433 = vmatpush2.msra.mxu0 0.0
    %434 = vmatprep.subr.mxu0 0.0
    %435 = vmatpush2.msra.mxu0 0.0
    %436 = vmatprep.subr.mxu0 0.0
    %437 = vmatpush2.msra.mxu0 0.0
    %438 = vmatprep.subr.mxu0 0.0
    %439 = vmatpush2.msra.mxu0 0.0
    %440 = vmatprep.subr.mxu0 0.0
    %441 = vmatpush2.msra.mxu0 0.0
    %442 = vmatprep.subr.mxu0 0.0
    %443 = vmatpush2.msra.mxu0 0.0
    %444 = vmatprep.subr.mxu0 0.0
    %445 = vmatpush2.msra.mxu0 0.0
    %446 = vmatprep.subr.mxu0 0.0
    %447 = vmatpush2.msra.mxu0 0.0
    %448 = vmatprep.subr.mxu0 0.0
    %449 = vmatpush2.msra.mxu0 0.0
    %450 = vmatprep.subr.mxu0 0.0
    %451 = vmatpush2.msra.mxu0 0.0
    %452 = vmatprep.subr.mxu0 0.0
    %453 = vmatpush2.msra.mxu0 0.0
    %454 = vmatprep.subr.mxu0 0.0
    %455 = vmatpush2.msra.mxu0 0.0
    %456 = vmatprep.subr.mxu0 0.0
    %457 = vmatpush2.msra.mxu0 0.0
    %458 = vmatprep.subr.mxu0 0.0
    %459 = vmatpush2.msra.mxu0 0.0
    %460 = vmatprep.mubr.f32.mxu0 0.0
    %461 = vmatmul.mubr.f32.gmra.mxu0 %v394
    %v462 = vpop.f32.mrf.mxu0
    %v463 = vadd.f32 %v390, %v462
    %v464 = vpop.f32.mrf.mxu0
    %465 = vdwg.mxu0
    %v466 = vmul.f32 %v20, %v53
    %v468 = vsel %vm63, %v466, 0
    %470 = vmatprep.subr.mxu0 0.0
    %471 = vmatpush1.xpose.msra.mxu0 0.0
    %472 = vmatprep.subr.mxu0 0.0
    %473 = vmatpush1.xpose.msra.mxu0 0.0
    %474 = vmatprep.subr.mxu0 0.0
    %475 = vmatpush1.xpose.msra.mxu0 0.0
    %476 = vmatprep.subr.mxu0 0.0
    %477 = vmatpush1.xpose.msra.mxu0 0.0
    %478 = vmatprep.subr.mxu0 0.0
    %479 = vmatpush1.xpose.msra.mxu0 0.0
    %480 = vmatprep.subr.mxu0 0.0
    %481 = vmatpush1.xpose.msra.mxu0 0.0
    %482 = vmatprep.subr.mxu0 0.0
    %483 = vmatpush1.xpose.msra.mxu0 0.0
    %484 = vmatprep.subr.mxu0 0.0
    %485 = vmatpush1.xpose.msra.mxu0 0.0
    %486 = vmatprep.subr.mxu0 0.0
    %487 = vmatpush1.xpose.msra.mxu0 0.0
    %488 = vmatprep.subr.mxu0 0.0
    %489 = vmatpush1.xpose.msra.mxu0 0.0
    %490 = vmatprep.subr.mxu0 0.0
    %491 = vmatpush1.xpose.msra.mxu0 0.0
    %492 = vmatprep.subr.mxu0 0.0
    %493 = vmatpush1.xpose.msra.mxu0 0.0
    %494 = vmatprep.subr.mxu0 0.0
    %495 = vmatpush1.xpose.msra.mxu0 0.0
    %496 = vmatprep.subr.mxu0 0.0
    %497 = vmatpush1.xpose.msra.mxu0 0.0
    %498 = vmatprep.subr.mxu0 0.0
    %499 = vmatpush1.xpose.msra.mxu0 0.0
    %500 = vmatprep.subr.mxu0 0.0
    %501 = vmatpush1.xpose.msra.mxu0 %v468
    %502 = vmatprep.subr.mxu0 0.0
    %503 = vmatpush2.xpose.msra.mxu0 0.0
    %504 = vmatprep.subr.mxu0 0.0
    %505 = vmatpush2.xpose.msra.mxu0 0.0
    %506 = vmatprep.subr.mxu0 0.0
    %507 = vmatpush2.xpose.msra.mxu0 0.0
    %508 = vmatprep.subr.mxu0 0.0
    %509 = vmatpush2.xpose.msra.mxu0 0.0
    %510 = vmatprep.subr.mxu0 0.0
    %511 = vmatpush2.xpose.msra.mxu0 0.0
    %512 = vmatprep.subr.mxu0 0.0
    %513 = vmatpush2.xpose.msra.mxu0 0.0
    %514 = vmatprep.subr.mxu0 0.0
    %515 = vmatpush2.xpose.msra.mxu0 0.0
    %516 = vmatprep.subr.mxu0 0.0
    %517 = vmatpush2.xpose.msra.mxu0 0.0
    %518 = vmatprep.subr.mxu0 0.0
    %519 = vmatpush2.xpose.msra.mxu0 0.0
    %520 = vmatprep.subr.mxu0 0.0
    %521 = vmatpush2.xpose.msra.mxu0 0.0
    %522 = vmatprep.subr.mxu0 0.0
    %523 = vmatpush2.xpose.msra.mxu0 0.0
    %524 = vmatprep.subr.mxu0 0.0
    %525 = vmatpush2.xpose.msra.mxu0 0.0
    %526 = vmatprep.subr.mxu0 0.0
    %527 = vmatpush2.xpose.msra.mxu0 0.0
    %528 = vmatprep.subr.mxu0 0.0
    %529 = vmatpush2.xpose.msra.mxu0 0.0
    %530 = vmatprep.subr.mxu0 0.0
    %531 = vmatpush2.xpose.msra.mxu0 0.0
    %532 = vmatprep.subr.mxu0 0.0
    %533 = vmatpush2.xpose.msra.mxu0 0.0
    %534 = vmatprep.mubr.f32.mxu0 0.0
    %535 = vmatmul.mubr.f32.gmra.mxu0 %v65
    %v536 = vpop.f32.mrf.mxu0
    %v537 = vadd.f32 0.0, %v536
    %v538 = vpop.f32.mrf.mxu0
    %539 = vdwg.mxu0
    %v540 = vmul.f32 %v537, 0.35355338
    %v541 = vsel %vm220, %v540, -inf
    %542 = vmax.xlane.f32.xlu0 %v541
    %v543 = vpop.xlane.xlu0 %542
    %v544 = vsub.f32 %v540, %v543
    %v545 = vmul.f32 %v544, 1.442695
    %v546 = vpow.pop %v545
    %v547 = vsel %vm220, %v546, 0.0
    %548 = vadd.xlane.f32.xlu0 %v547
    %v549 = vpop.xlane.xlu0 %548
    %v550 = vrcp.pop %v549
    %v551 = vmul.f32 %v546, %v550
    %v552 = vmul.f32 %v22, %v53
    %v554 = vsel %vm220, %v551, 0
    %556 = vmatprep.subr.mxu0 0.0
    %557 = vmatpush1.msra.mxu0 0.0
    %558 = vmatprep.subr.mxu0 0.0
    %559 = vmatpush1.msra.mxu0 0.0
    %560 = vmatprep.subr.mxu0 0.0
    %561 = vmatpush1.msra.mxu0 0.0
    %562 = vmatprep.subr.mxu0 0.0
    %563 = vmatpush1.msra.mxu0 0.0
    %564 = vmatprep.subr.mxu0 0.0
    %565 = vmatpush1.msra.mxu0 0.0
    %566 = vmatprep.subr.mxu0 0.0
    %567 = vmatpush1.msra.mxu0 0.0
    %568 = vmatprep.subr.mxu0 0.0
    %569 = vmatpush1.msra.mxu0 0.0
    %570 = vmatprep.subr.mxu0 0.0
    %571 = vmatpush1.msra.mxu0 0.0
    %572 = vmatprep.subr.mxu0 0.0
    %573 = vmatpush1.msra.mxu0 0.0
    %574 = vmatprep.subr.mxu0 0.0
    %575 = vmatpush1.msra.mxu0 0.0
    %576 = vmatprep.subr.mxu0 0.0
    %577 = vmatpush1.msra.mxu0 0.0
    %578 = vmatprep.subr.mxu0 0.0
    %579 = vmatpush1.msra.mxu0 0.0
    %580 = vmatprep.subr.mxu0 0.0
    %581 = vmatpush1.msra.mxu0 0.0
    %582 = vmatprep.subr.mxu0 0.0
    %583 = vmatpush1.msra.mxu0 0.0
    %584 = vmatprep.subr.mxu0 0.0
    %585 = vmatpush1.msra.mxu0 0.0
    %586 = vmatprep.subr.mxu0 0.0
    %587 = vmatpush1.msra.mxu0 %v552
    %588 = vmatprep.subr.mxu0 0.0
    %589 = vmatpush2.msra.mxu0 0.0
    %590 = vmatprep.subr.mxu0 0.0
    %591 = vmatpush2.msra.mxu0 0.0
    %592 = vmatprep.subr.mxu0 0.0
    %593 = vmatpush2.msra.mxu0 0.0
    %594 = vmatprep.subr.mxu0 0.0
    %595 = vmatpush2.msra.mxu0 0.0
    %596 = vmatprep.subr.mxu0 0.0
    %597 = vmatpush2.msra.mxu0 0.0
    %598 = vmatprep.subr.mxu0 0.0
    %599 = vmatpush2.msra.mxu0 0.0
    %600 = vmatprep.subr.mxu0 0.0
    %601 = vmatpush2.msra.mxu0 0.0
    %602 = vmatprep.subr.mxu0 0.0
    %603 = vmatpush2.msra.mxu0 0.0
    %604 = vmatprep.subr.mxu0 0.0
    %605 = vmatpush2.msra.mxu0 0.0
    %606 = vmatprep.subr.mxu0 0.0
    %607 = vmatpush2.msra.mxu0 0.0
    %608 = vmatprep.subr.mxu0 0.0
    %609 = vmatpush2.msra.mxu0 0.0
    %610 = vmatprep.subr.mxu0 0.0
    %611 = vmatpush2.msra.mxu0 0.0
    %612 = vmatprep.subr.mxu0 0.0
    %613 = vmatpush2.msra.mxu0 0.0
    %614 = vmatprep.subr.mxu0 0.0
    %615 = vmatpush2.msra.mxu0 0.0
    %616 = vmatprep.subr.mxu0 0.0
    %617 = vmatpush2.msra.mxu0 0.0
    %618 = vmatprep.subr.mxu0 0.0
    %619 = vmatpush2.msra.mxu0 0.0
    %620 = vmatprep.mubr.f32.mxu0 0.0
    %621 = vmatmul.mubr.f32.gmra.mxu0 %v554
    %v622 = vpop.f32.mrf.mxu0
    %v623 = vadd.f32 0.0, %v622
    %v624 = vpop.f32.mrf.mxu0
    %625 = vdwg.mxu0
    %v626 = vadd.f32 %v463, %v623
    %v627 = vmul.f32 %v20, %v58
    %v629 = vsel %vm63, %v627, 0
    %631 = vmatprep.subr.mxu0 0.0
    %632 = vmatpush1.xpose.msra.mxu0 0.0
    %633 = vmatprep.subr.mxu0 0.0
    %634 = vmatpush1.xpose.msra.mxu0 0.0
    %635 = vmatprep.subr.mxu0 0.0
    %636 = vmatpush1.xpose.msra.mxu0 0.0
    %637 = vmatprep.subr.mxu0 0.0
    %638 = vmatpush1.xpose.msra.mxu0 0.0
    %639 = vmatprep.subr.mxu0 0.0
    %640 = vmatpush1.xpose.msra.mxu0 0.0
    %641 = vmatprep.subr.mxu0 0.0
    %642 = vmatpush1.xpose.msra.mxu0 0.0
    %643 = vmatprep.subr.mxu0 0.0
    %644 = vmatpush1.xpose.msra.mxu0 0.0
    %645 = vmatprep.subr.mxu0 0.0
    %646 = vmatpush1.xpose.msra.mxu0 0.0
    %647 = vmatprep.subr.mxu0 0.0
    %648 = vmatpush1.xpose.msra.mxu0 0.0
    %649 = vmatprep.subr.mxu0 0.0
    %650 = vmatpush1.xpose.msra.mxu0 0.0
    %651 = vmatprep.subr.mxu0 0.0
    %652 = vmatpush1.xpose.msra.mxu0 0.0
    %653 = vmatprep.subr.mxu0 0.0
    %654 = vmatpush1.xpose.msra.mxu0 0.0
    %655 = vmatprep.subr.mxu0 0.0
    %656 = vmatpush1.xpose.msra.mxu0 0.0
    %657 = vmatprep.subr.mxu0 0.0
    %658 = vmatpush1.xpose.msra.mxu0 0.0
    %659 = vmatprep.subr.mxu0 0.0
    %660 = vmatpush1.xpose.msra.mxu0 0.0
    %661 = vmatprep.subr.mxu0 0.0
    %662 = vmatpush1.xpose.msra.mxu0 %v629
    %663 = vmatprep.subr.mxu0 0.0
    %664 = vmatpush2.xpose.msra.mxu0 0.0
    %665 = vmatprep.subr.mxu0 0.0
    %666 = vmatpush2.xpose.msra.mxu0 0.0
    %667 = vmatprep.subr.mxu0 0.0
    %668 = vmatpush2.xpose.msra.mxu0 0.0
    %669 = vmatprep.subr.mxu0 0.0
    %670 = vmatpush2.xpose.msra.mxu0 0.0
    %671 = vmatprep.subr.mxu0 0.0
    %672 = vmatpush2.xpose.msra.mxu0 0.0
    %673 = vmatprep.subr.mxu0 0.0
    %674 = vmatpush2.xpose.msra.mxu0 0.0
    %675 = vmatprep.subr.mxu0 0.0
    %676 = vmatpush2.xpose.msra.mxu0 0.0
    %677 = vmatprep.subr.mxu0 0.0
    %678 = vmatpush2.xpose.msra.mxu0 0.0
    %679 = vmatprep.subr.mxu0 0.0
    %680 = vmatpush2.xpose.msra.mxu0 0.0
    %681 = vmatprep.subr.mxu0 0.0
    %682 = vmatpush2.xpose.msra.mxu0 0.0
    %683 = vmatprep.subr.mxu0 0.0
    %684 = vmatpush2.xpose.msra.mxu0 0.0
    %685 = vmatprep.subr.mxu0 0.0
    %686 = vmatpush2.xpose.msra.mxu0 0.0
    %687 = vmatprep.subr.mxu0 0.0
    %688 = vmatpush2.xpose.msra.mxu0 0.0
    %689 = vmatprep.subr.mxu0 0.0
    %690 = vmatpush2.xpose.msra.mxu0 0.0
    %691 = vmatprep.subr.mxu0 0.0
    %692 = vmatpush2.xpose.msra.mxu0 0.0
    %693 = vmatprep.subr.mxu0 0.0
    %694 = vmatpush2.xpose.msra.mxu0 0.0
    %695 = vmatprep.mubr.f32.mxu0 0.0
    %696 = vmatmul.mubr.f32.gmra.mxu0 %v65
    %v697 = vpop.f32.mrf.mxu0
    %v698 = vadd.f32 0.0, %v697
    %v699 = vpop.f32.mrf.mxu0
    %700 = vdwg.mxu0
    %v701 = vmul.f32 %v698, 0.35355338
    %v702 = vsel %vm220, %v701, -inf
    %703 = vmax.xlane.f32.xlu0 %v702
    %v704 = vpop.xlane.xlu0 %703
    %v705 = vsub.f32 %v701, %v704
    %v706 = vmul.f32 %v705, 1.442695
    %v707 = vpow.pop %v706
    %v708 = vsel %vm220, %v707, 0.0
    %709 = vadd.xlane.f32.xlu0 %v708
    %v710 = vpop.xlane.xlu0 %709
    %v711 = vrcp.pop %v710
    %v712 = vmul.f32 %v707, %v711
    %v713 = vmul.f32 %v22, %v58
    %v715 = vsel %vm220, %v712, 0
    %717 = vmatprep.subr.mxu0 0.0
    %718 = vmatpush1.msra.mxu0 0.0
    %719 = vmatprep.subr.mxu0 0.0
    %720 = vmatpush1.msra.mxu0 0.0
    %721 = vmatprep.subr.mxu0 0.0
    %722 = vmatpush1.msra.mxu0 0.0
    %723 = vmatprep.subr.mxu0 0.0
    %724 = vmatpush1.msra.mxu0 0.0
    %725 = vmatprep.subr.mxu0 0.0
    %726 = vmatpush1.msra.mxu0 0.0
    %727 = vmatprep.subr.mxu0 0.0
    %728 = vmatpush1.msra.mxu0 0.0
    %729 = vmatprep.subr.mxu0 0.0
    %730 = vmatpush1.msra.mxu0 0.0
    %731 = vmatprep.subr.mxu0 0.0
    %732 = vmatpush1.msra.mxu0 0.0
    %733 = vmatprep.subr.mxu0 0.0
    %734 = vmatpush1.msra.mxu0 0.0
    %735 = vmatprep.subr.mxu0 0.0
    %736 = vmatpush1.msra.mxu0 0.0
    %737 = vmatprep.subr.mxu0 0.0
    %738 = vmatpush1.msra.mxu0 0.0
    %739 = vmatprep.subr.mxu0 0.0
    %740 = vmatpush1.msra.mxu0 0.0
    %741 = vmatprep.subr.mxu0 0.0
    %742 = vmatpush1.msra.mxu0 0.0
    %743 = vmatprep.subr.mxu0 0.0
    %744 = vmatpush1.msra.mxu0 0.0
    %745 = vmatprep.subr.mxu0 0.0
    %746 = vmatpush1.msra.mxu0 0.0
    %747 = vmatprep.subr.mxu0 0.0
    %748 = vmatpush1.msra.mxu0 %v713
    %749 = vmatprep.subr.mxu0 0.0
    %750 = vmatpush2.msra.mxu0 0.0
    %751 = vmatprep.subr.mxu0 0.0
    %752 = vmatpush2.msra.mxu0 0.0
    %753 = vmatprep.subr.mxu0 0.0
    %754 = vmatpush2.msra.mxu0 0.0
    %755 = vmatprep.subr.mxu0 0.0
    %756 = vmatpush2.msra.mxu0 0.0
    %757 = vmatprep.subr.mxu0 0.0
    %758 = vmatpush2.msra.mxu0 0.0
    %759 = vmatprep.subr.mxu0 0.0
    %760 = vmatpush2.msra.mxu0 0.0
    %761 = vmatprep.subr.mxu0 0.0
    %762 = vmatpush2.msra.mxu0 0.0
    %763 = vmatprep.subr.mxu0 0.0
    %764 = vmatpush2.msra.mxu0 0.0
    %765 = vmatprep.subr.mxu0 0.0
    %766 = vmatpush2.msra.mxu0 0.0
    %767 = vmatprep.subr.mxu0 0.0
    %768 = vmatpush2.msra.mxu0 0.0
    %769 = vmatprep.subr.mxu0 0.0
    %770 = vmatpush2.msra.mxu0 0.0
    %771 = vmatprep.subr.mxu0 0.0
    %772 = vmatpush2.msra.mxu0 0.0
    %773 = vmatprep.subr.mxu0 0.0
    %774 = vmatpush2.msra.mxu0 0.0
    %775 = vmatprep.subr.mxu0 0.0
    %776 = vmatpush2.msra.mxu0 0.0
    %777 = vmatprep.subr.mxu0 0.0
    %778 = vmatpush2.msra.mxu0 0.0
    %779 = vmatprep.subr.mxu0 0.0
    %780 = vmatpush2.msra.mxu0 0.0
    %781 = vmatprep.mubr.f32.mxu0 0.0
    %782 = vmatmul.mubr.f32.gmra.mxu0 %v715
    %v783 = vpop.f32.mrf.mxu0
    %v784 = vadd.f32 0.0, %v783
    %v785 = vpop.f32.mrf.mxu0
    %786 = vdwg.mxu0
    %v787 = vadd.f32 %v626, %v784
    %v789 = vsel %vm63, %v787, 0
    %791 = vmatprep.subr.mxu0 0.0
    %792 = vmatpush1.msra.mxu0 0.0
    %793 = vmatprep.subr.mxu0 0.0
    %794 = vmatpush1.msra.mxu0 0.0
    %795 = vmatprep.subr.mxu0 0.0
    %796 = vmatpush1.msra.mxu0 0.0
    %797 = vmatprep.subr.mxu0 0.0
    %798 = vmatpush1.msra.mxu0 0.0
    %799 = vmatprep.subr.mxu0 0.0
    %800 = vmatpush1.msra.mxu0 0.0
    %801 = vmatprep.subr.mxu0 0.0
    %802 = vmatpush1.msra.mxu0 0.0
    %803 = vmatprep.subr.mxu0 0.0
    %804 = vmatpush1.msra.mxu0 0.0
    %805 = vmatprep.subr.mxu0 0.0
    %806 = vmatpush1.msra.mxu0 0.0
    %807 = vmatprep.subr.mxu0 0.0
    %808 = vmatpush1.msra.mxu0 0.0
    %809 = vmatprep.subr.mxu0 0.0
    %810 = vmatpush1.msra.mxu0 0.0
    %811 = vmatprep.subr.mxu0 0.0
    %812 = vmatpush1.msra.mxu0 0.0
    %813 = vmatprep.subr.mxu0 0.0
    %814 = vmatpush1.msra.mxu0 0.0
    %815 = vmatprep.subr.mxu0 0.0
    %816 = vmatpush1.msra.mxu0 %v33
    %817 = vmatprep.subr.mxu0 0.0
    %818 = vmatpush1.msra.mxu0 %v32
    %819 = vmatprep.subr.mxu0 0.0
    %820 = vmatpush1.msra.mxu0 %v31
    %821 = vmatprep.subr.mxu0 0.0
    %822 = vmatpush1.msra.mxu0 %v30
    %823 = vmatprep.subr.mxu0 0.0
    %824 = vmatpush2.msra.mxu0 0.0
    %825 = vmatprep.subr.mxu0 0.0
    %826 = vmatpush2.msra.mxu0 0.0
    %827 = vmatprep.subr.mxu0 0.0
    %828 = vmatpush2.msra.mxu0 0.0
    %829 = vmatprep.subr.mxu0 0.0
    %830 = vmatpush2.msra.mxu0 0.0
    %831 = vmatprep.subr.mxu0 0.0
    %832 = vmatpush2.msra.mxu0 0.0
    %833 = vmatprep.subr.mxu0 0.0
    %834 = vmatpush2.msra.mxu0 0.0
    %835 = vmatprep.subr.mxu0 0.0
    %836 = vmatpush2.msra.mxu0 0.0
    %837 = vmatprep.subr.mxu0 0.0
    %838 = vmatpush2.msra.mxu0 0.0
    %839 = vmatprep.subr.mxu0 0.0
    %840 = vmatpush2.msra.mxu0 0.0
    %841 = vmatprep.subr.mxu0 0.0
    %842 = vmatpush2.msra.mxu0 0.0
    %843 = vmatprep.subr.mxu0 0.0
    %844 = vmatpush2.msra.mxu0 0.0
    %845 = vmatprep.subr.mxu0 0.0
    %846 = vmatpush2.msra.mxu0 0.0
    %847 = vmatprep.subr.mxu0 0.0
    %848 = vmatpush2.msra.mxu0 0.0
    %849 = vmatprep.subr.mxu0 0.0
    %850 = vmatpush2.msra.mxu0 0.0
    %851 = vmatprep.subr.mxu0 0.0
    %852 = vmatpush2.msra.mxu0 0.0
    %853 = vmatprep.subr.mxu0 0.0
    %854 = vmatpush2.msra.mxu0 0.0
    %855 = vmatprep.mubr.f32.mxu0 0.0
    %856 = vmatmul.mubr.f32.gmra.mxu0 %v789
    %v857 = vpop.f32.mrf.mxu0
    %v858 = vadd.f32 0.0, %v857
    %v859 = vpop.f32.mrf.mxu0
    %860 = vdwg.mxu0
    %v861 = vadd.f32 %v137, %v24
    %v862 = vadd.f32 %v861, %v858
    %v863 = vsel %vm63, %v862, 0.0
    %864 = vadd.xlane.f32.xlu0 %v863
    %v865 = vpop.xlane.xlu0 %864
    %v866 = vrcp.pop 32.0
    %v867 = vmul.f32 %v865, %v866
    %v868 = vsub.f32 %v862, %v867
    %v869 = vmul.f32 %v868, %v868
    %v870 = vsel %vm63, %v869, 0.0
    %871 = vadd.xlane.f32.xlu0 %v870
    %v872 = vpop.xlane.xlu0 %871
    %v873 = vmul.f32 %v872, %v866
    %v874 = vadd.f32 %v873, 1e-05
    %v875 = vrsqrt.pop %v874
    %v876 = vmul.f32 %v868, %v875
    %v877 = vlaneseq
    %v878 = vshrl.u32 %v877, 7
    %v879 = vsub.s32 0, %v878
    %v880 = vrot.slane %v35, %v879
    %v881 = vmul.f32 %v876, %v880
    %v882 = vlaneseq
    %v883 = vshrl.u32 %v882, 7
    %v884 = vsub.s32 0, %v883
    %v885 = vrot.slane %v36, %v884
    %v886 = vadd.f32 %v881, %v885
    %887 = vst.msk [vmem:[#allocation2] sm:$0xff] %vm63, %v886
    %v888 = vmul.f32 %v21, %v43
    %v890 = vsel %vm63, %v888, 0
    %892 = vmatprep.subr.mxu0 0.0
    %893 = vmatpush1.xpose.msra.mxu0 0.0
    %894 = vmatprep.subr.mxu0 0.0
    %895 = vmatpush1.xpose.msra.mxu0 0.0
    %896 = vmatprep.subr.mxu0 0.0
    %897 = vmatpush1.xpose.msra.mxu0 0.0
    %898 = vmatprep.subr.mxu0 0.0
    %899 = vmatpush1.xpose.msra.mxu0 0.0
    %900 = vmatprep.subr.mxu0 0.0
    %901 = vmatpush1.xpose.msra.mxu0 0.0
    %902 = vmatprep.subr.mxu0 0.0
    %903 = vmatpush1.xpose.msra.mxu0 0.0
    %904 = vmatprep.subr.mxu0 0.0
    %905 = vmatpush1.xpose.msra.mxu0 0.0
    %906 = vmatprep.subr.mxu0 0.0
    %907 = vmatpush1.xpose.msra.mxu0 0.0
    %908 = vmatprep.subr.mxu0 0.0
    %909 = vmatpush1.xpose.msra.mxu0 0.0
    %910 = vmatprep.subr.mxu0 0.0
    %911 = vmatpush1.xpose.msra.mxu0 0.0
    %912 = vmatprep.subr.mxu0 0.0
    %913 = vmatpush1.xpose.msra.mxu0 0.0
    %914 = vmatprep.subr.mxu0 0.0
    %915 = vmatpush1.xpose.msra.mxu0 0.0
    %916 = vmatprep.subr.mxu0 0.0
    %917 = vmatpush1.xpose.msra.mxu0 0.0
    %918 = vmatprep.subr.mxu0 0.0
    %919 = vmatpush1.xpose.msra.mxu0 0.0
    %920 = vmatprep.subr.mxu0 0.0
    %921 = vmatpush1.xpose.msra.mxu0 0.0
    %922 = vmatprep.subr.mxu0 0.0
    %923 = vmatpush1.xpose.msra.mxu0 %v890
    %924 = vmatprep.subr.mxu0 0.0
    %925 = vmatpush2.xpose.msra.mxu0 0.0
    %926 = vmatprep.subr.mxu0 0.0
    %927 = vmatpush2.xpose.msra.mxu0 0.0
    %928 = vmatprep.subr.mxu0 0.0
    %929 = vmatpush2.xpose.msra.mxu0 0.0
    %930 = vmatprep.subr.mxu0 0.0
    %931 = vmatpush2.xpose.msra.mxu0 0.0
    %932 = vmatprep.subr.mxu0 0.0
    %933 = vmatpush2.xpose.msra.mxu0 0.0
    %934 = vmatprep.subr.mxu0 0.0
    %935 = vmatpush2.xpose.msra.mxu0 0.0
    %936 = vmatprep.subr.mxu0 0.0
    %937 = vmatpush2.xpose.msra.mxu0 0.0
    %938 = vmatprep.subr.mxu0 0.0
    %939 = vmatpush2.xpose.msra.mxu0 0.0
    %940 = vmatprep.subr.mxu0 0.0
    %941 = vmatpush2.xpose.msra.mxu0 0.0
    %942 = vmatprep.subr.mxu0 0.0
    %943 = vmatpush2.xpose.msra.mxu0 0.0
    %944 = vmatprep.subr.mxu0 0.0
    %945 = vmatpush2.xpose.msra.mxu0 0.0
    %946 = vmatprep.subr.mxu0 0.0
    %947 = vmatpush2.xpose.msra.mxu0 0.0
    %948 = vmatprep.subr.mxu0 0.0
    %949 = vmatpush2.xpose.msra.mxu0 0.0
    %950 = vmatprep.subr.mxu0 0.0
    %951 = vmatpush2.xpose.msra.mxu0 0.0
    %952 = vmatprep.subr.mxu0 0.0
    %953 = vmatpush2.xpose.msra.mxu0 0.0
    %954 = vmatprep.subr.mxu0 0.0
    %955 = vmatpush2.xpose.msra.mxu0 0.0
    %956 = vmatprep.mubr.f32.mxu0 0.0
    %957 = vmatmul.mubr.f32.gmra.mxu0 %v68
    %v958 = vpop.f32.mrf.mxu0
    %v959 = vadd.f32 0.0, %v958
    %v960 = vpop.f32.mrf.mxu0
    %961 = vdwg.mxu0
    %v962 = vmul.f32 %v959, 0.35355338
    %v963 = vsel %vm220, %v962, -inf
    %964 = vmax.xlane.f32.xlu0 %v963
    %v965 = vpop.xlane.xlu0 %964
    %v966 = vsub.f32 %v962, %v965
    %v967 = vmul.f32 %v966, 1.442695
    %v968 = vpow.pop %v967
    %v969 = vsel %vm220, %v968, 0.0
    %970 = vadd.xlane.f32.xlu0 %v969
    %v971 = vpop.xlane.xlu0 %970
    %v972 = vrcp.pop %v971
    %v973 = vmul.f32 %v968, %v972
    %v974 = vmul.f32 %v23, %v43
    %v975 = vmul.f32 %v21, %v48
    %v977 = vsel %vm63, %v975, 0
    %979 = vmatprep.subr.mxu0 0.0
    %980 = vmatpush1.xpose.msra.mxu0 0.0
    %981 = vmatprep.subr.mxu0 0.0
    %982 = vmatpush1.xpose.msra.mxu0 0.0
    %983 = vmatprep.subr.mxu0 0.0
    %984 = vmatpush1.xpose.msra.mxu0 0.0
    %985 = vmatprep.subr.mxu0 0.0
    %986 = vmatpush1.xpose.msra.mxu0 0.0
    %987 = vmatprep.subr.mxu0 0.0
    %988 = vmatpush1.xpose.msra.mxu0 0.0
    %989 = vmatprep.subr.mxu0 0.0
    %990 = vmatpush1.xpose.msra.mxu0 0.0
    %991 = vmatprep.subr.mxu0 0.0
    %992 = vmatpush1.xpose.msra.mxu0 0.0
    %993 = vmatprep.subr.mxu0 0.0
    %994 = vmatpush1.xpose.msra.mxu0 0.0
    %995 = vmatprep.subr.mxu0 0.0
    %996 = vmatpush1.xpose.msra.mxu0 0.0
    %997 = vmatprep.subr.mxu0 0.0
    %998 = vmatpush1.xpose.msra.mxu0 0.0
    %999 = vmatprep.subr.mxu0 0.0
    %1000 = vmatpush1.xpose.msra.mxu0 0.0
    %1001 = vmatprep.subr.mxu0 0.0
    %1002 = vmatpush1.xpose.msra.mxu0 0.0
    %1003 = vmatprep.subr.mxu0 0.0
    %1004 = vmatpush1.xpose.msra.mxu0 0.0
    %1005 = vmatprep.subr.mxu0 0.0
    %1006 = vmatpush1.xpose.msra.mxu0 0.0
    %1007 = vmatprep.subr.mxu0 0.0
    %1008 = vmatpush1.xpose.msra.mxu0 0.0
    %1009 = vmatprep.subr.mxu0 0.0
    %1010 = vmatpush1.xpose.msra.mxu0 %v977
    %1011 = vmatprep.subr.mxu0 0.0
    %1012 = vmatpush2.xpose.msra.mxu0 0.0
    %1013 = vmatprep.subr.mxu0 0.0
    %1014 = vmatpush2.xpose.msra.mxu0 0.0
    %1015 = vmatprep.subr.mxu0 0.0
    %1016 = vmatpush2.xpose.msra.mxu0 0.0
    %1017 = vmatprep.subr.mxu0 0.0
    %1018 = vmatpush2.xpose.msra.mxu0 0.0
    %1019 = vmatprep.subr.mxu0 0.0
    %1020 = vmatpush2.xpose.msra.mxu0 0.0
    %1021 = vmatprep.subr.mxu0 0.0
    %1022 = vmatpush2.xpose.msra.mxu0 0.0
    %1023 = vmatprep.subr.mxu0 0.0
    %1024 = vmatpush2.xpose.msra.mxu0 0.0
    %1025 = vmatprep.subr.mxu0 0.0
    %1026 = vmatpush2.xpose.msra.mxu0 0.0
    %1027 = vmatprep.subr.mxu0 0.0
    %1028 = vmatpush2.xpose.msra.mxu0 0.0
    %1029 = vmatprep.subr.mxu0 0.0
    %1030 = vmatpush2.xpose.msra.mxu0 0.0
    %1031 = vmatprep.subr.mxu0 0.0
    %1032 = vmatpush2.xpose.msra.mxu0 0.0
    %1033 = vmatprep.subr.mxu0 0.0
    %1034 = vmatpush2.xpose.msra.mxu0 0.0
    %1035 = vmatprep.subr.mxu0 0.0
    %1036 = vmatpush2.xpose.msra.mxu0 0.0
    %1037 = vmatprep.subr.mxu0 0.0
    %1038 = vmatpush2.xpose.msra.mxu0 0.0
    %1039 = vmatprep.subr.mxu0 0.0
    %1040 = vmatpush2.xpose.msra.mxu0 0.0
    %1041 = vmatprep.subr.mxu0 0.0
    %1042 = vmatpush2.xpose.msra.mxu0 0.0
    %1043 = vmatprep.mubr.f32.mxu0 0.0
    %1044 = vmatmul.mubr.f32.gmra.mxu0 %v68
    %v1045 = vpop.f32.mrf.mxu0
    %v1046 = vadd.f32 0.0, %v1045
    %v1047 = vpop.f32.mrf.mxu0
    %1048 = vdwg.mxu0
    %v1049 = vmul.f32 %v1046, 0.35355338
    %v1050 = vsel %vm220, %v1049, -inf
    %1051 = vmax.xlane.f32.xlu0 %v1050
    %v1052 = vpop.xlane.xlu0 %1051
    %v1053 = vsub.f32 %v1049, %v1052
    %v1054 = vmul.f32 %v1053, 1.442695
    %v1055 = vpow.pop %v1054
    %v1056 = vsel %vm220, %v1055, 0.0
    %1057 = vadd.xlane.f32.xlu0 %v1056
    %v1058 = vpop.xlane.xlu0 %1057
    %v1059 = vrcp.pop %v1058
    %v1060 = vmul.f32 %v1055, %v1059
    %v1061 = vmul.f32 %v23, %v48
    %v1063 = vsel %vm220, %v1060, 0
    %1065 = vmatprep.subr.mxu0 0.0
    %1066 = vmatpush1.msra.mxu0 0.0
    %1067 = vmatprep.subr.mxu0 0.0
    %1068 = vmatpush1.msra.mxu0 0.0
    %1069 = vmatprep.subr.mxu0 0.0
    %1070 = vmatpush1.msra.mxu0 0.0
    %1071 = vmatprep.subr.mxu0 0.0
    %1072 = vmatpush1.msra.mxu0 0.0
    %1073 = vmatprep.subr.mxu0 0.0
    %1074 = vmatpush1.msra.mxu0 0.0
    %1075 = vmatprep.subr.mxu0 0.0
    %1076 = vmatpush1.msra.mxu0 0.0
    %1077 = vmatprep.subr.mxu0 0.0
    %1078 = vmatpush1.msra.mxu0 0.0
    %1079 = vmatprep.subr.mxu0 0.0
    %1080 = vmatpush1.msra.mxu0 0.0
    %1081 = vmatprep.subr.mxu0 0.0
    %1082 = vmatpush1.msra.mxu0 0.0
    %1083 = vmatprep.subr.mxu0 0.0
    %1084 = vmatpush1.msra.mxu0 0.0
    %1085 = vmatprep.subr.mxu0 0.0
    %1086 = vmatpush1.msra.mxu0 0.0
    %1087 = vmatprep.subr.mxu0 0.0
    %1088 = vmatpush1.msra.mxu0 0.0
    %1089 = vmatprep.subr.mxu0 0.0
    %1090 = vmatpush1.msra.mxu0 0.0
    %1091 = vmatprep.subr.mxu0 0.0
    %1092 = vmatpush1.msra.mxu0 0.0
    %1093 = vmatprep.subr.mxu0 0.0
    %1094 = vmatpush1.msra.mxu0 0.0
    %1095 = vmatprep.subr.mxu0 0.0
    %1096 = vmatpush1.msra.mxu0 %v1061
    %1097 = vmatprep.subr.mxu0 0.0
    %1098 = vmatpush2.msra.mxu0 0.0
    %1099 = vmatprep.subr.mxu0 0.0
    %1100 = vmatpush2.msra.mxu0 0.0
    %1101 = vmatprep.subr.mxu0 0.0
    %1102 = vmatpush2.msra.mxu0 0.0
    %1103 = vmatprep.subr.mxu0 0.0
    %1104 = vmatpush2.msra.mxu0 0.0
    %1105 = vmatprep.subr.mxu0 0.0
    %1106 = vmatpush2.msra.mxu0 0.0
    %1107 = vmatprep.subr.mxu0 0.0
    %1108 = vmatpush2.msra.mxu0 0.0
    %1109 = vmatprep.subr.mxu0 0.0
    %1110 = vmatpush2.msra.mxu0 0.0
    %1111 = vmatprep.subr.mxu0 0.0
    %1112 = vmatpush2.msra.mxu0 0.0
    %1113 = vmatprep.subr.mxu0 0.0
    %1114 = vmatpush2.msra.mxu0 0.0
    %1115 = vmatprep.subr.mxu0 0.0
    %1116 = vmatpush2.msra.mxu0 0.0
    %1117 = vmatprep.subr.mxu0 0.0
    %1118 = vmatpush2.msra.mxu0 0.0
    %1119 = vmatprep.subr.mxu0 0.0
    %1120 = vmatpush2.msra.mxu0 0.0
    %1121 = vmatprep.subr.mxu0 0.0
    %1122 = vmatpush2.msra.mxu0 0.0
    %1123 = vmatprep.subr.mxu0 0.0
    %1124 = vmatpush2.msra.mxu0 0.0
    %1125 = vmatprep.subr.mxu0 0.0
    %1126 = vmatpush2.msra.mxu0 0.0
    %1127 = vmatprep.subr.mxu0 0.0
    %1128 = vmatpush2.msra.mxu0 0.0
    %1129 = vmatprep.mubr.f32.mxu0 0.0
    %1130 = vmatmul.mubr.f32.gmra.mxu0 %v1063
    %v1131 = vpop.f32.mrf.mxu0
    %v1132 = vadd.f32 0.0, %v1131
    %v1133 = vpop.f32.mrf.mxu0
    %1134 = vdwg.mxu0
    %v1136 = vsel %vm220, %v973, 0
    %1138 = vmatprep.subr.mxu0 0.0
    %1139 = vmatpush1.msra.mxu0 0.0
    %1140 = vmatprep.subr.mxu0 0.0
    %1141 = vmatpush1.msra.mxu0 0.0
    %1142 = vmatprep.subr.mxu0 0.0
    %1143 = vmatpush1.msra.mxu0 0.0
    %1144 = vmatprep.subr.mxu0 0.0
    %1145 = vmatpush1.msra.mxu0 0.0
    %1146 = vmatprep.subr.mxu0 0.0
    %1147 = vmatpush1.msra.mxu0 0.0
    %1148 = vmatprep.subr.mxu0 0.0
    %1149 = vmatpush1.msra.mxu0 0.0
    %1150 = vmatprep.subr.mxu0 0.0
    %1151 = vmatpush1.msra.mxu0 0.0
    %1152 = vmatprep.subr.mxu0 0.0
    %1153 = vmatpush1.msra.mxu0 0.0
    %1154 = vmatprep.subr.mxu0 0.0
    %1155 = vmatpush1.msra.mxu0 0.0
    %1156 = vmatprep.subr.mxu0 0.0
    %1157 = vmatpush1.msra.mxu0 0.0
    %1158 = vmatprep.subr.mxu0 0.0
    %1159 = vmatpush1.msra.mxu0 0.0
    %1160 = vmatprep.subr.mxu0 0.0
    %1161 = vmatpush1.msra.mxu0 0.0
    %1162 = vmatprep.subr.mxu0 0.0
    %1163 = vmatpush1.msra.mxu0 0.0
    %1164 = vmatprep.subr.mxu0 0.0
    %1165 = vmatpush1.msra.mxu0 0.0
    %1166 = vmatprep.subr.mxu0 0.0
    %1167 = vmatpush1.msra.mxu0 0.0
    %1168 = vmatprep.subr.mxu0 0.0
    %1169 = vmatpush1.msra.mxu0 %v974
    %1170 = vmatprep.subr.mxu0 0.0
    %1171 = vmatpush2.msra.mxu0 0.0
    %1172 = vmatprep.subr.mxu0 0.0
    %1173 = vmatpush2.msra.mxu0 0.0
    %1174 = vmatprep.subr.mxu0 0.0
    %1175 = vmatpush2.msra.mxu0 0.0
    %1176 = vmatprep.subr.mxu0 0.0
    %1177 = vmatpush2.msra.mxu0 0.0
    %1178 = vmatprep.subr.mxu0 0.0
    %1179 = vmatpush2.msra.mxu0 0.0
    %1180 = vmatprep.subr.mxu0 0.0
    %1181 = vmatpush2.msra.mxu0 0.0
    %1182 = vmatprep.subr.mxu0 0.0
    %1183 = vmatpush2.msra.mxu0 0.0
    %1184 = vmatprep.subr.mxu0 0.0
    %1185 = vmatpush2.msra.mxu0 0.0
    %1186 = vmatprep.subr.mxu0 0.0
    %1187 = vmatpush2.msra.mxu0 0.0
    %1188 = vmatprep.subr.mxu0 0.0
    %1189 = vmatpush2.msra.mxu0 0.0
    %1190 = vmatprep.subr.mxu0 0.0
    %1191 = vmatpush2.msra.mxu0 0.0
    %1192 = vmatprep.subr.mxu0 0.0
    %1193 = vmatpush2.msra.mxu0 0.0
    %1194 = vmatprep.subr.mxu0 0.0
    %1195 = vmatpush2.msra.mxu0 0.0
    %1196 = vmatprep.subr.mxu0 0.0
    %1197 = vmatpush2.msra.mxu0 0.0
    %1198 = vmatprep.subr.mxu0 0.0
    %1199 = vmatpush2.msra.mxu0 0.0
    %1200 = vmatprep.subr.mxu0 0.0
    %1201 = vmatpush2.msra.mxu0 0.0
    %1202 = vmatprep.mubr.f32.mxu0 0.0
    %1203 = vmatmul.mubr.f32.gmra.mxu0 %v1136
    %v1204 = vpop.f32.mrf.mxu0
    %v1205 = vadd.f32 %v1132, %v1204
    %v1206 = vpop.f32.mrf.mxu0
    %1207 = vdwg.mxu0
    %v1208 = vmul.f32 %v21, %v53
    %v1210 = vsel %vm63, %v1208, 0
    %1212 = vmatprep.subr.mxu0 0.0
    %1213 = vmatpush1.xpose.msra.mxu0 0.0
    %1214 = vmatprep.subr.mxu0 0.0
    %1215 = vmatpush1.xpose.msra.mxu0 0.0
    %1216 = vmatprep.subr.mxu0 0.0
    %1217 = vmatpush1.xpose.msra.mxu0 0.0
    %1218 = vmatprep.subr.mxu0 0.0
    %1219 = vmatpush1.xpose.msra.mxu0 0.0
    %1220 = vmatprep.subr.mxu0 0.0
    %1221 = vmatpush1.xpose.msra.mxu0 0.0
    %1222 = vmatprep.subr.mxu0 0.0
    %1223 = vmatpush1.xpose.msra.mxu0 0.0
    %1224 = vmatprep.subr.mxu0 0.0
    %1225 = vmatpush1.xpose.msra.mxu0 0.0
    %1226 = vmatprep.subr.mxu0 0.0
    %1227 = vmatpush1.xpose.msra.mxu0 0.0
    %1228 = vmatprep.subr.mxu0 0.0
    %1229 = vmatpush1.xpose.msra.mxu0 0.0
    %1230 = vmatprep.subr.mxu0 0.0
    %1231 = vmatpush1.xpose.msra.mxu0 0.0
    %1232 = vmatprep.subr.mxu0 0.0
    %1233 = vmatpush1.xpose.msra.mxu0 0.0
    %1234 = vmatprep.subr.mxu0 0.0
    %1235 = vmatpush1.xpose.msra.mxu0 0.0
    %1236 = vmatprep.subr.mxu0 0.0
    %1237 = vmatpush1.xpose.msra.mxu0 0.0
    %1238 = vmatprep.subr.mxu0 0.0
    %1239 = vmatpush1.xpose.msra.mxu0 0.0
    %1240 = vmatprep.subr.mxu0 0.0
    %1241 = vmatpush1.xpose.msra.mxu0 0.0
    %1242 = vmatprep.subr.mxu0 0.0
    %1243 = vmatpush1.xpose.msra.mxu0 %v1210
    %1244 = vmatprep.subr.mxu0 0.0
    %1245 = vmatpush2.xpose.msra.mxu0 0.0
    %1246 = vmatprep.subr.mxu0 0.0
    %1247 = vmatpush2.xpose.msra.mxu0 0.0
    %1248 = vmatprep.subr.mxu0 0.0
    %1249 = vmatpush2.xpose.msra.mxu0 0.0
    %1250 = vmatprep.subr.mxu0 0.0
    %1251 = vmatpush2.xpose.msra.mxu0 0.0
    %1252 = vmatprep.subr.mxu0 0.0
    %1253 = vmatpush2.xpose.msra.mxu0 0.0
    %1254 = vmatprep.subr.mxu0 0.0
    %1255 = vmatpush2.xpose.msra.mxu0 0.0
    %1256 = vmatprep.subr.mxu0 0.0
    %1257 = vmatpush2.xpose.msra.mxu0 0.0
    %1258 = vmatprep.subr.mxu0 0.0
    %1259 = vmatpush2.xpose.msra.mxu0 0.0
    %1260 = vmatprep.subr.mxu0 0.0
    %1261 = vmatpush2.xpose.msra.mxu0 0.0
    %1262 = vmatprep.subr.mxu0 0.0
    %1263 = vmatpush2.xpose.msra.mxu0 0.0
    %1264 = vmatprep.subr.mxu0 0.0
    %1265 = vmatpush2.xpose.msra.mxu0 0.0
    %1266 = vmatprep.subr.mxu0 0.0
    %1267 = vmatpush2.xpose.msra.mxu0 0.0
    %1268 = vmatprep.subr.mxu0 0.0
    %1269 = vmatpush2.xpose.msra.mxu0 0.0
    %1270 = vmatprep.subr.mxu0 0.0
    %1271 = vmatpush2.xpose.msra.mxu0 0.0
    %1272 = vmatprep.subr.mxu0 0.0
    %1273 = vmatpush2.xpose.msra.mxu0 0.0
    %1274 = vmatprep.subr.mxu0 0.0
    %1275 = vmatpush2.xpose.msra.mxu0 0.0
    %1276 = vmatprep.mubr.f32.mxu0 0.0
    %1277 = vmatmul.mubr.f32.gmra.mxu0 %v68
    %v1278 = vpop.f32.mrf.mxu0
    %v1279 = vadd.f32 0.0, %v1278
    %v1280 = vpop.f32.mrf.mxu0
    %1281 = vdwg.mxu0
    %v1282 = vmul.f32 %v1279, 0.35355338
    %v1283 = vsel %vm220, %v1282, -inf
    %1284 = vmax.xlane.f32.xlu0 %v1283
    %v1285 = vpop.xlane.xlu0 %1284
    %v1286 = vsub.f32 %v1282, %v1285
    %v1287 = vmul.f32 %v1286, 1.442695
    %v1288 = vpow.pop %v1287
    %v1289 = vsel %vm220, %v1288, 0.0
    %1290 = vadd.xlane.f32.xlu0 %v1289
    %v1291 = vpop.xlane.xlu0 %1290
    %v1292 = vrcp.pop %v1291
    %v1293 = vmul.f32 %v1288, %v1292
    %v1294 = vmul.f32 %v23, %v53
    %v1296 = vsel %vm220, %v1293, 0
    %1298 = vmatprep.subr.mxu0 0.0
    %1299 = vmatpush1.msra.mxu0 0.0
    %1300 = vmatprep.subr.mxu0 0.0
    %1301 = vmatpush1.msra.mxu0 0.0
    %1302 = vmatprep.subr.mxu0 0.0
    %1303 = vmatpush1.msra.mxu0 0.0
    %1304 = vmatprep.subr.mxu0 0.0
    %1305 = vmatpush1.msra.mxu0 0.0
    %1306 = vmatprep.subr.mxu0 0.0
    %1307 = vmatpush1.msra.mxu0 0.0
    %1308 = vmatprep.subr.mxu0 0.0
    %1309 = vmatpush1.msra.mxu0 0.0
    %1310 = vmatprep.subr.mxu0 0.0
    %1311 = vmatpush1.msra.mxu0 0.0
    %1312 = vmatprep.subr.mxu0 0.0
    %1313 = vmatpush1.msra.mxu0 0.0
    %1314 = vmatprep.subr.mxu0 0.0
    %1315 = vmatpush1.msra.mxu0 0.0
    %1316 = vmatprep.subr.mxu0 0.0
    %1317 = vmatpush1.msra.mxu0 0.0
    %1318 = vmatprep.subr.mxu0 0.0
    %1319 = vmatpush1.msra.mxu0 0.0
    %1320 = vmatprep.subr.mxu0 0.0
    %1321 = vmatpush1.msra.mxu0 0.0
    %1322 = vmatprep.subr.mxu0 0.0
    %1323 = vmatpush1.msra.mxu0 0.0
    %1324 = vmatprep.subr.mxu0 0.0
    %1325 = vmatpush1.msra.mxu0 0.0
    %1326 = vmatprep.subr.mxu0 0.0
    %1327 = vmatpush1.msra.mxu0 0.0
    %1328 = vmatprep.subr.mxu0 0.0
    %1329 = vmatpush1.msra.mxu0 %v1294
    %1330 = vmatprep.subr.mxu0 0.0
    %1331 = vmatpush2.msra.mxu0 0.0
    %1332 = vmatprep.subr.mxu0 0.0
    %1333 = vmatpush2.msra.mxu0 0.0
    %1334 = vmatprep.subr.mxu0 0.0
    %1335 = vmatpush2.msra.mxu0 0.0
    %1336 = vmatprep.subr.mxu0 0.0
    %1337 = vmatpush2.msra.mxu0 0.0
    %1338 = vmatprep.subr.mxu0 0.0
    %1339 = vmatpush2.msra.mxu0 0.0
    %1340 = vmatprep.subr.mxu0 0.0
    %1341 = vmatpush2.msra.mxu0 0.0
    %1342 = vmatprep.subr.mxu0 0.0
    %1343 = vmatpush2.msra.mxu0 0.0
    %1344 = vmatprep.subr.mxu0 0.0
    %1345 = vmatpush2.msra.mxu0 0.0
    %1346 = vmatprep.subr.mxu0 0.0
    %1347 = vmatpush2.msra.mxu0 0.0
    %1348 = vmatprep.subr.mxu0 0.0
    %1349 = vmatpush2.msra.mxu0 0.0
    %1350 = vmatprep.subr.mxu0 0.0
    %1351 = vmatpush2.msra.mxu0 0.0
    %1352 = vmatprep.subr.mxu0 0.0
    %1353 = vmatpush2.msra.mxu0 0.0
    %1354 = vmatprep.subr.mxu0 0.0
    %1355 = vmatpush2.msra.mxu0 0.0
    %1356 = vmatprep.subr.mxu0 0.0
    %1357 = vmatpush2.msra.mxu0 0.0
    %1358 = vmatprep.subr.mxu0 0.0
    %1359 = vmatpush2.msra.mxu0 0.0
    %1360 = vmatprep.subr.mxu0 0.0
    %1361 = vmatpush2.msra.mxu0 0.0
    %1362 = vmatprep.mubr.f32.mxu0 0.0
    %1363 = vmatmul.mubr.f32.gmra.mxu0 %v1296
    %v1364 = vpop.f32.mrf.mxu0
    %v1365 = vadd.f32 0.0, %v1364
    %v1366 = vpop.f32.mrf.mxu0
    %1367 = vdwg.mxu0
    %v1368 = vadd.f32 %v1205, %v1365
    %v1369 = vmul.f32 %v21, %v58
    %v1371 = vsel %vm63, %v1369, 0
    %1373 = vmatprep.subr.mxu0 0.0
    %1374 = vmatpush1.xpose.msra.mxu0 0.0
    %1375 = vmatprep.subr.mxu0 0.0
    %1376 = vmatpush1.xpose.msra.mxu0 0.0
    %1377 = vmatprep.subr.mxu0 0.0
    %1378 = vmatpush1.xpose.msra.mxu0 0.0
    %1379 = vmatprep.subr.mxu0 0.0
    %1380 = vmatpush1.xpose.msra.mxu0 0.0
    %1381 = vmatprep.subr.mxu0 0.0
    %1382 = vmatpush1.xpose.msra.mxu0 0.0
    %1383 = vmatprep.subr.mxu0 0.0
    %1384 = vmatpush1.xpose.msra.mxu0 0.0
    %1385 = vmatprep.subr.mxu0 0.0
    %1386 = vmatpush1.xpose.msra.mxu0 0.0
    %1387 = vmatprep.subr.mxu0 0.0
    %1388 = vmatpush1.xpose.msra.mxu0 0.0
    %1389 = vmatprep.subr.mxu0 0.0
    %1390 = vmatpush1.xpose.msra.mxu0 0.0
    %1391 = vmatprep.subr.mxu0 0.0
    %1392 = vmatpush1.xpose.msra.mxu0 0.0
    %1393 = vmatprep.subr.mxu0 0.0
    %1394 = vmatpush1.xpose.msra.mxu0 0.0
    %1395 = vmatprep.subr.mxu0 0.0
    %1396 = vmatpush1.xpose.msra.mxu0 0.0
    %1397 = vmatprep.subr.mxu0 0.0
    %1398 = vmatpush1.xpose.msra.mxu0 0.0
    %1399 = vmatprep.subr.mxu0 0.0
    %1400 = vmatpush1.xpose.msra.mxu0 0.0
    %1401 = vmatprep.subr.mxu0 0.0
    %1402 = vmatpush1.xpose.msra.mxu0 0.0
    %1403 = vmatprep.subr.mxu0 0.0
    %1404 = vmatpush1.xpose.msra.mxu0 %v1371
    %1405 = vmatprep.subr.mxu0 0.0
    %1406 = vmatpush2.xpose.msra.mxu0 0.0
    %1407 = vmatprep.subr.mxu0 0.0
    %1408 = vmatpush2.xpose.msra.mxu0 0.0
    %1409 = vmatprep.subr.mxu0 0.0
    %1410 = vmatpush2.xpose.msra.mxu0 0.0
    %1411 = vmatprep.subr.mxu0 0.0
    %1412 = vmatpush2.xpose.msra.mxu0 0.0
    %1413 = vmatprep.subr.mxu0 0.0
    %1414 = vmatpush2.xpose.msra.mxu0 0.0
    %1415 = vmatprep.subr.mxu0 0.0
    %1416 = vmatpush2.xpose.msra.mxu0 0.0
    %1417 = vmatprep.subr.mxu0 0.0
    %1418 = vmatpush2.xpose.msra.mxu0 0.0
    %1419 = vmatprep.subr.mxu0 0.0
    %1420 = vmatpush2.xpose.msra.mxu0 0.0
    %1421 = vmatprep.subr.mxu0 0.0
    %1422 = vmatpush2.xpose.msra.mxu0 0.0
    %1423 = vmatprep.subr.mxu0 0.0
    %1424 = vmatpush2.xpose.msra.mxu0 0.0
    %1425 = vmatprep.subr.mxu0 0.0
    %1426 = vmatpush2.xpose.msra.mxu0 0.0
    %1427 = vmatprep.subr.mxu0 0.0
    %1428 = vmatpush2.xpose.msra.mxu0 0.0
    %1429 = vmatprep.subr.mxu0 0.0
    %1430 = vmatpush2.xpose.msra.mxu0 0.0
    %1431 = vmatprep.subr.mxu0 0.0
    %1432 = vmatpush2.xpose.msra.mxu0 0.0
    %1433 = vmatprep.subr.mxu0 0.0
    %1434 = vmatpush2.xpose.msra.mxu0 0.0
    %1435 = vmatprep.subr.mxu0 0.0
    %1436 = vmatpush2.xpose.msra.mxu0 0.0
    %1437 = vmatprep.mubr.f32.mxu0 0.0
    %1438 = vmatmul.mubr.f32.gmra.mxu0 %v68
    %v1439 = vpop.f32.mrf.mxu0
    %v1440 = vadd.f32 0.0, %v1439
    %v1441 = vpop.f32.mrf.mxu0
    %1442 = vdwg.mxu0
    %v1443 = vmul.f32 %v1440, 0.35355338
    %v1444 = vsel %vm220, %v1443, -inf
    %1445 = vmax.xlane.f32.xlu0 %v1444
    %v1446 = vpop.xlane.xlu0 %1445
    %v1447 = vsub.f32 %v1443, %v1446
    %v1448 = vmul.f32 %v1447, 1.442695
    %v1449 = vpow.pop %v1448
    %v1450 = vsel %vm220, %v1449, 0.0
    %1451 = vadd.xlane.f32.xlu0 %v1450
    %v1452 = vpop.xlane.xlu0 %1451
    %v1453 = vrcp.pop %v1452
    %v1454 = vmul.f32 %v1449, %v1453
    %v1455 = vmul.f32 %v23, %v58
    %v1457 = vsel %vm220, %v1454, 0
    %1459 = vmatprep.subr.mxu0 0.0
    %1460 = vmatpush1.msra.mxu0 0.0
    %1461 = vmatprep.subr.mxu0 0.0
    %1462 = vmatpush1.msra.mxu0 0.0
    %1463 = vmatprep.subr.mxu0 0.0
    %1464 = vmatpush1.msra.mxu0 0.0
    %1465 = vmatprep.subr.mxu0 0.0
    %1466 = vmatpush1.msra.mxu0 0.0
    %1467 = vmatprep.subr.mxu0 0.0
    %1468 = vmatpush1.msra.mxu0 0.0
    %1469 = vmatprep.subr.mxu0 0.0
    %1470 = vmatpush1.msra.mxu0 0.0
    %1471 = vmatprep.subr.mxu0 0.0
    %1472 = vmatpush1.msra.mxu0 0.0
    %1473 = vmatprep.subr.mxu0 0.0
    %1474 = vmatpush1.msra.mxu0 0.0
    %1475 = vmatprep.subr.mxu0 0.0
    %1476 = vmatpush1.msra.mxu0 0.0
    %1477 = vmatprep.subr.mxu0 0.0
    %1478 = vmatpush1.msra.mxu0 0.0
    %1479 = vmatprep.subr.mxu0 0.0
    %1480 = vmatpush1.msra.mxu0 0.0
    %1481 = vmatprep.subr.mxu0 0.0
    %1482 = vmatpush1.msra.mxu0 0.0
    %1483 = vmatprep.subr.mxu0 0.0
    %1484 = vmatpush1.msra.mxu0 0.0
    %1485 = vmatprep.subr.mxu0 0.0
    %1486 = vmatpush1.msra.mxu0 0.0
    %1487 = vmatprep.subr.mxu0 0.0
    %1488 = vmatpush1.msra.mxu0 0.0
    %1489 = vmatprep.subr.mxu0 0.0
    %1490 = vmatpush1.msra.mxu0 %v1455
    %1491 = vmatprep.subr.mxu0 0.0
    %1492 = vmatpush2.msra.mxu0 0.0
    %1493 = vmatprep.subr.mxu0 0.0
    %1494 = vmatpush2.msra.mxu0 0.0
    %1495 = vmatprep.subr.mxu0 0.0
    %1496 = vmatpush2.msra.mxu0 0.0
    %1497 = vmatprep.subr.mxu0 0.0
    %1498 = vmatpush2.msra.mxu0 0.0
    %1499 = vmatprep.subr.mxu0 0.0
    %1500 = vmatpush2.msra.mxu0 0.0
    %1501 = vmatprep.subr.mxu0 0.0
    %1502 = vmatpush2.msra.mxu0 0.0
    %1503 = vmatprep.subr.mxu0 0.0
    %1504 = vmatpush2.msra.mxu0 0.0
    %1505 = vmatprep.subr.mxu0 0.0
    %1506 = vmatpush2.msra.mxu0 0.0
    %1507 = vmatprep.subr.mxu0 0.0
    %1508 = vmatpush2.msra.mxu0 0.0
    %1509 = vmatprep.subr.mxu0 0.0
    %1510 = vmatpush2.msra.mxu0 0.0
    %1511 = vmatprep.subr.mxu0 0.0
    %1512 = vmatpush2.msra.mxu0 0.0
    %1513 = vmatprep.subr.mxu0 0.0
    %1514 = vmatpush2.msra.mxu0 0.0
    %1515 = vmatprep.subr.mxu0 0.0
    %1516 = vmatpush2.msra.mxu0 0.0
    %1517 = vmatprep.subr.mxu0 0.0
    %1518 = vmatpush2.msra.mxu0 0.0
    %1519 = vmatprep.subr.mxu0 0.0
    %1520 = vmatpush2.msra.mxu0 0.0
    %1521 = vmatprep.subr.mxu0 0.0
    %1522 = vmatpush2.msra.mxu0 0.0
    %1523 = vmatprep.mubr.f32.mxu0 0.0
    %1524 = vmatmul.mubr.f32.gmra.mxu0 %v1457
    %v1525 = vpop.f32.mrf.mxu0
    %v1526 = vadd.f32 0.0, %v1525
    %v1527 = vpop.f32.mrf.mxu0
    %1528 = vdwg.mxu0
    %v1529 = vadd.f32 %v1368, %v1526
    %v1531 = vsel %vm63, %v1529, 0
    %1533 = vmatprep.subr.mxu0 0.0
    %1534 = vmatpush1.msra.mxu0 0.0
    %1535 = vmatprep.subr.mxu0 0.0
    %1536 = vmatpush1.msra.mxu0 0.0
    %1537 = vmatprep.subr.mxu0 0.0
    %1538 = vmatpush1.msra.mxu0 0.0
    %1539 = vmatprep.subr.mxu0 0.0
    %1540 = vmatpush1.msra.mxu0 0.0
    %1541 = vmatprep.subr.mxu0 0.0
    %1542 = vmatpush1.msra.mxu0 0.0
    %1543 = vmatprep.subr.mxu0 0.0
    %1544 = vmatpush1.msra.mxu0 0.0
    %1545 = vmatprep.subr.mxu0 0.0
    %1546 = vmatpush1.msra.mxu0 0.0
    %1547 = vmatprep.subr.mxu0 0.0
    %1548 = vmatpush1.msra.mxu0 0.0
    %1549 = vmatprep.subr.mxu0 0.0
    %1550 = vmatpush1.msra.mxu0 0.0
    %1551 = vmatprep.subr.mxu0 0.0
    %1552 = vmatpush1.msra.mxu0 0.0
    %1553 = vmatprep.subr.mxu0 0.0
    %1554 = vmatpush1.msra.mxu0 0.0
    %1555 = vmatprep.subr.mxu0 0.0
    %1556 = vmatpush1.msra.mxu0 0.0
    %1557 = vmatprep.subr.mxu0 0.0
    %1558 = vmatpush1.msra.mxu0 %v33
    %1559 = vmatprep.subr.mxu0 0.0
    %1560 = vmatpush1.msra.mxu0 %v32
    %1561 = vmatprep.subr.mxu0 0.0
    %1562 = vmatpush1.msra.mxu0 %v31
    %1563 = vmatprep.subr.mxu0 0.0
    %1564 = vmatpush1.msra.mxu0 %v30
    %1565 = vmatprep.subr.mxu0 0.0
    %1566 = vmatpush2.msra.mxu0 0.0
    %1567 = vmatprep.subr.mxu0 0.0
    %1568 = vmatpush2.msra.mxu0 0.0
    %1569 = vmatprep.subr.mxu0 0.0
    %1570 = vmatpush2.msra.mxu0 0.0
    %1571 = vmatprep.subr.mxu0 0.0
    %1572 = vmatpush2.msra.mxu0 0.0
    %1573 = vmatprep.subr.mxu0 0.0
    %1574 = vmatpush2.msra.mxu0 0.0
    %1575 = vmatprep.subr.mxu0 0.0
    %1576 = vmatpush2.msra.mxu0 0.0
    %1577 = vmatprep.subr.mxu0 0.0
    %1578 = vmatpush2.msra.mxu0 0.0
    %1579 = vmatprep.subr.mxu0 0.0
    %1580 = vmatpush2.msra.mxu0 0.0
    %1581 = vmatprep.subr.mxu0 0.0
    %1582 = vmatpush2.msra.mxu0 0.0
    %1583 = vmatprep.subr.mxu0 0.0
    %1584 = vmatpush2.msra.mxu0 0.0
    %1585 = vmatprep.subr.mxu0 0.0
    %1586 = vmatpush2.msra.mxu0 0.0
    %1587 = vmatprep.subr.mxu0 0.0
    %1588 = vmatpush2.msra.mxu0 0.0
    %1589 = vmatprep.subr.mxu0 0.0
    %1590 = vmatpush2.msra.mxu0 0.0
    %1591 = vmatprep.subr.mxu0 0.0
    %1592 = vmatpush2.msra.mxu0 0.0
    %1593 = vmatprep.subr.mxu0 0.0
    %1594 = vmatpush2.msra.mxu0 0.0
    %1595 = vmatprep.subr.mxu0 0.0
    %1596 = vmatpush2.msra.mxu0 0.0
    %1597 = vmatprep.mubr.f32.mxu0 0.0
    %1598 = vmatmul.mubr.f32.gmra.mxu0 %v1531
    %v1599 = vpop.f32.mrf.mxu0
    %v1600 = vadd.f32 0.0, %v1599
    %v1601 = vpop.f32.mrf.mxu0
    %1602 = vdwg.mxu0
    %v1603 = vadd.f32 %v142, %v25
    %v1604 = vadd.f32 %v1603, %v1600
    %v1605 = vsel %vm63, %v1604, 0.0
    %1606 = vadd.xlane.f32.xlu0 %v1605
    %v1607 = vpop.xlane.xlu0 %1606
    %v1608 = vmul.f32 %v1607, %v866
    %v1609 = vsub.f32 %v1604, %v1608
    %v1610 = vmul.f32 %v1609, %v1609
    %v1611 = vsel %vm63, %v1610, 0.0
    %1612 = vadd.xlane.f32.xlu0 %v1611
    %v1613 = vpop.xlane.xlu0 %1612
    %v1614 = vmul.f32 %v1613, %v866
    %v1615 = vadd.f32 %v1614, 1e-05
    %v1616 = vrsqrt.pop %v1615
    %v1617 = vmul.f32 %v1609, %v1616
    %v1618 = vmul.f32 %v1617, %v880
    %v1619 = vadd.f32 %v1618, %v885
    %1620 = vst.msk [vmem:[#allocation2 + $0x8] sm:$0xff] %vm63, %v1619
    %1621 = vst.msk [vmem:[%s5] sm:$0xff] %vm220, %v231
    %1622 = vst.msk [vmem:[%s5 + $0x8] sm:$0xff] %vm220, %v973
    %1623 = vst.msk [vmem:[%s5 + $0x10] sm:$0xff] %vm220, %v318
    %1624 = vst.msk [vmem:[%s5 + $0x18] sm:$0xff] %vm220, %v1060
    %1625 = vst.msk [vmem:[%s5 + $0x20] sm:$0xff] %vm220, %v551
    %1626 = vst.msk [vmem:[%s5 + $0x28] sm:$0xff] %vm220, %v1293
    %1627 = vst.msk [vmem:[%s5 + $0x30] sm:$0xff] %vm220, %v712
    %1628 = vst.msk [vmem:[%s5 + $0x38] sm:$0xff] %vm220, %v1454
    // Predicated region
    $region18: #{tpu_custom_call.1} parent=1 // pred_check
      _
    $region19: #{tpu_custom_call.1} parent=1 // pred_check_branch
      %1630 = sbr.rel (0) target = $region21
    $region20: #{tpu_custom_call.1} parent=1 // pred_region
      %s1632 = ssub.s32 256, 256
      %1633 = vsyncadd [#allocation3], %s1632
      %s1634 = sshll.u32 [#allocation2], 4
      %s1635 = int_to_ptr.vmem [resolvable:$true] %s1634
      %1640 = dma.vmem_to_hbm [thread:$0]  %s1635, 256, %s4, [#allocation3], 128, 128, 8
    $region21: #{tpu_custom_call.1} parent=1 // pred_fallthru
      _
    // Predicated region
    $region22: #{tpu_custom_call.1} parent=1 // pred_check
      _
    $region23: #{tpu_custom_call.1} parent=1 // pred_check_branch
      %1642 = sbr.rel (0) target = $region25
    $region24: #{tpu_custom_call.1} parent=1 // pred_region
      _
    $region25: #{tpu_custom_call.1} parent=1 // pred_fallthru
      _
    // Predicated region
    $region26: #{tpu_custom_call.1} parent=1 // pred_check
      _
    $region27: #{tpu_custom_call.1} parent=1 // pred_check_branch
      %1644 = sbr.rel (0) target = $region29
    $region28: #{tpu_custom_call.1} parent=1 // pred_region
      %1645 = dma.done [#allocation3], 256
    $region29: #{tpu_custom_call.1} parent=1 // pred_fallthru
      _
    // Predicated region
    $region30: #{tpu_custom_call.1} parent=1 // pred_check
      _
    $region31: #{tpu_custom_call.1} parent=1 // pred_check_branch
      %1647 = sbr.rel (0) target = $region33
    $region32: #{tpu_custom_call.1} parent=1 // pred_region
      _
    $region33: #{tpu_custom_call.1} parent=1 // pred_fallthru
      _
    %1648 = vsyncpa [#allocation3], 1

</llo_original>
